<compile_context>
chip_gen: v6e
topology: v6e:2x2x1
jax: 0.10.0
libtpu: 0.0.40
codegen_flags: <defaults>
</compile_context>

<pallas_src>
import functools

import numpy as np

import jax
import jax.numpy as jnp
from jax.experimental import pallas as pl
from jax.experimental.pallas import tpu as pltpu  # noqa: F401  (TPU backend)


# ------------------------------ fused kernel -------------------------------

def _fused_block_kernel(x_ref, mask_ref, w1_ref, b1_ref, w2_ref, b2_ref,
                        w3_ref, b3_ref, wsc_ref, bsc_ref, gamma_ref, beta_ref,
                        fold_ref, expand_ref, o_ref, *, MO, NBLK, SC_BLK, WO, eps):
    f32 = jnp.float32
    x = x_ref[...]                                            # (NBLK*MO, JP*Cin)

    # --- conv1 (1x1) + ReLU over ALL window blocks in one matmul ------------
    # conv2's implicit zero-padding of h1 is applied with one precombined mask.
    h1 = jnp.dot(x, w1_ref[...], preferred_element_type=f32)
    h1 = jnp.maximum(h1 + b1_ref[...], 0.0) * mask_ref[...]  # (NBLK*MO, JP*Ch)

    # --- conv2 (KxK, stride 2): one sublane-aligned row-window matmul per
    # (ky, px) block; kx lane shifts are folded into w2_ref so there is no
    # in-kernel lane slicing. Balanced-tree accumulate (short dep chain).
    parts = [jnp.dot(h1[b * MO:(b + 1) * MO, :], w2_ref[b],
                     preferred_element_type=f32) for b in range(NBLK)]
    while len(parts) > 1:
        parts = [parts[i] + parts[i + 1] for i in range(0, len(parts), 2)]
    h2 = jnp.maximum(parts[0] + b2_ref[...], 0.0)             # (MO, Wo*Ch)

    # --- conv3 (1x1), no activation ------------------------------------------
    h3 = jnp.dot(h2, w3_ref[...], preferred_element_type=f32) + b3_ref[...]

    # --- shortcut (1x1 conv, stride 2): aligned row window, lane shift folded
    # into wsc_ref (raw padded input already has zeros at pad positions).
    sc = jnp.dot(x[SC_BLK * MO:(SC_BLK + 1) * MO, :], wsc_ref[...],
                 preferred_element_type=f32) + bsc_ref[...]

    # --- BatchNorm2d (training-mode batch stats), single pass ----------------
    # sum and sum-of-squares reductions are independent -> run concurrently.
    inv_cnt = 1.0 / float(MO * WO)
    s1 = jnp.sum(h3, axis=0, keepdims=True)                   # (1, Wo*Cout)
    s2 = jnp.sum(h3 * h3, axis=0, keepdims=True)
    mean_c = jnp.dot(s1, fold_ref[...], preferred_element_type=f32) * inv_cnt
    ex2_c = jnp.dot(s2, fold_ref[...], preferred_element_type=f32) * inv_cnt
    var_c = jnp.maximum(ex2_c - mean_c * mean_c, 0.0)
    inv_c = jax.lax.rsqrt(var_c + eps)
    scale_c = gamma_ref[...] * inv_c
    shift_c = beta_ref[...] - mean_c * scale_c
    scale_t = jnp.dot(scale_c, expand_ref[...], preferred_element_type=f32)
    shift_t = jnp.dot(shift_c, expand_ref[...], preferred_element_type=f32)

    # --- residual add + final ReLU -------------------------------------------
    # TODO(synk): output lanes are Wo*Cout = 32 (<128) -> masked partial store;
    #             a lane-dense output slab only matters at much larger sizes.
    o_ref[...] = jnp.maximum(h3 * scale_t + shift_t + sc, 0.0)


# ------------------------- one-time prep + forward --------------------------

def make_tsy_forward(params, x_shape, *, kernel_size=4, stride=2,
                     padding_adjuster=1, eps=1e-5):
    """Builds all kernel-layout constants ONCE and returns a jitted forward
    whose per-call work is only a tiny input relayout + one pallas_call."""
    K = kernel_size
    pad = (K - 1) // 2 + padding_adjuster
    # TODO(synk): the fused kernel is specialized to the module defaults
    # (kernel_size=4, stride=2 -> pad=2); other hyper-parameters need a
    # different window decomposition.
    assert K == 4 and stride == 2 and pad == 2
    N, Cin, H, W = x_shape
    assert H % 2 == 1 and W % 2 == 1, "residual add needs odd spatial (as in PyTorch)"

    w1 = np.asarray(params["w1"], np.float32)
    b1 = np.asarray(params["b1"], np.float32)
    w2 = np.asarray(params["w2"], np.float32)      # (K, K, Ch, Ch)
    b2 = np.asarray(params["b2"], np.float32)
    w3 = np.asarray(params["w3"], np.float32)
    b3 = np.asarray(params["b3"], np.float32)
    wsc = np.asarray(params["wsc"], np.float32)
    bsc = np.asarray(params["bsc"], np.float32)
    gamma = np.asarray(params["gamma"], np.float32)
    beta = np.asarray(params["beta"], np.float32)
    Ch, Cout = w1.shape[1], w3.shape[1]

    Ho = (H + 2 * pad - K) // stride + 1
    Wo = (W + 2 * pad - K) // stride + 1
    IP, JP = Ho + 1, Wo + 1
    MO = Ho * N
    NBLK = K * stride            # row-window blocks, indexed blk = ky*stride + px
    NQY = K // stride            # row-window groups per phase
    SC_BLK = pad * stride        # shortcut reads block (ky=pad, px=0)
    SC_SHIFT = pad // stride     # shortcut lane-block shift (folded into weights)

    # ---- block-diagonal / tap-folded weights (one-time, host side) ----------
    w1bd = np.kron(np.eye(JP, dtype=np.float32), w1)            # (JP*Cin, JP*Ch)
    b1t = np.tile(b1, JP)[None, :]
    w2c = np.zeros((NBLK, JP * Ch, Wo * Ch), np.float32)        # kx folded per blk
    for blk in range(NBLK):
        ky, px = blk // stride, blk % stride
        for qx in range(K // stride):
            tap = w2[ky, px + stride * qx]                      # (Ch, Ch)
            for jo in range(Wo):
                ji = jo + qx
                w2c[blk, ji * Ch:(ji + 1) * Ch, jo * Ch:(jo + 1) * Ch] = tap
    b2t = np.tile(b2, Wo)[None, :]
    w3bd = np.kron(np.eye(Wo, dtype=np.float32), w3)            # (Wo*Ch, Wo*Cout)
    b3t = np.tile(b3, Wo)[None, :]
    wscbd = np.zeros((JP * Cin, Wo * Cout), np.float32)         # shifted diag
    for jo in range(Wo):
        ji = jo + SC_SHIFT
        wscbd[ji * Cin:(ji + 1) * Cin, jo * Cout:(jo + 1) * Cout] = wsc
    bsct = np.tile(bsc, Wo)[None, :]
    fold = np.kron(np.ones((Wo, 1), np.float32), np.eye(Cout, dtype=np.float32))
    expand = np.ascontiguousarray(fold.T)

    # ---- combined 2-D validity mask for h1 (conv2 zero padding), one-time ---
    ky_b = (np.arange(NBLK) // stride)[:, None, None, None, None]
    px_b = (np.arange(NBLK) % stride)[:, None, None, None, None]
    i_b = np.arange(Ho)[None, :, None, None, None]
    j_b = np.arange(JP)[None, None, None, :, None]
    hp = ky_b + stride * i_b                                    # padded row coord
    wp = px_b + stride * j_b                                    # padded col coord
    ok = (hp >= pad) & (hp <= pad + H - 1) & (wp >= pad) & (wp <= pad + W - 1)
    mask = np.broadcast_to(ok, (NBLK, Ho, N, JP, Ch)).astype(np.float32)
    mask = mask.reshape(NBLK * MO, JP * Ch)

    consts = tuple(jnp.asarray(a) for a in (
        mask, w1bd, b1t, w2c, b2t, w3bd, b3t, wscbd, bsct,
        gamma[None, :], beta[None, :], fold, expand))

    kernel = functools.partial(_fused_block_kernel, MO=MO, NBLK=NBLK,
                               SC_BLK=SC_BLK, WO=Wo, eps=eps)
    out_shape = jax.ShapeDtypeStruct((MO, Wo * Cout), jnp.float32)

    # TODO(synk): for larger N/H/W, add a grid over batch/row tiles with
    #             dimension_semantics=("parallel",) (v7x dual-TC) and BlockSpecs
    #             that keep the weights resident; pointless at this size.
    @jax.jit
    def forward(x_nchw):
        # minimal per-call glue: relayout x into stacked stride-2 row windows
        #   rows  = blk*Ho*N + ho*N + n   (blk = ky*stride + px)
        #   lanes = j*Cin + c
        xf = jnp.transpose(x_nchw.astype(jnp.float32), (0, 2, 3, 1))          # NHWC
        xp = jnp.pad(xf, ((0, 0), (pad, pad + 1), (pad, pad + 1), (0, 0)))    # even
        xr = xp.reshape(N, xp.shape[1] // 2, 2, xp.shape[2] // 2, 2, Cin)
        # -> (py, px, i, n, j, c), keep i < IP, j < JP
        ph = jnp.transpose(xr, (2, 4, 1, 0, 3, 5))[:, :, :IP, :, :JP, :]
        ph = ph.reshape(stride * stride, IP * N, JP * Cin)                    # 4 phases
        xstk = jnp.stack([ph[:, qy * N:qy * N + MO, :] for qy in range(NQY)], 0)
        xstk = xstk.reshape(NBLK * MO, JP * Cin)

        y2d = pl.pallas_call(kernel, out_shape=out_shape)(xstk, *consts)

        # TODO(synk): BatchNorm running-stat buffer updates (module state) are
        #             not reproduced; they do not affect the forward output.
        y = y2d.reshape(Ho, N, Wo, Cout)                 # rows=ho*N+n, lanes=wo*Cout+c
        return jnp.transpose(y, (1, 3, 0, 2))            # -> NCHW

    return forward


# --------------------------- pure-JAX reference ----------------------------

def reference(x, params, kernel_size=4, stride=2, padding_adjuster=1, eps=1e-5):
    pad = (kernel_size - 1) // 2 + padding_adjuster

    def conv(inp, w_oihw, b, s, p):
        y = jax.lax.conv_general_dilated(
            inp, w_oihw, (s, s), [(p, p), (p, p)],
            dimension_numbers=("NCHW", "OIHW", "NCHW"))
        return y + b.reshape(1, -1, 1, 1)

    w1 = jnp.transpose(params["w1"])[:, :, None, None]
    w2 = jnp.transpose(params["w2"], (3, 2, 0, 1))
    w3 = jnp.transpose(params["w3"])[:, :, None, None]
    wsc = jnp.transpose(params["wsc"])[:, :, None, None]

    h = jax.nn.relu(conv(x, w1, params["b1"], 1, 0))
    h = jax.nn.relu(conv(h, w2, params["b2"], stride, pad))
    h = conv(h, w3, params["b3"], 1, 0)
    mean = h.mean(axis=(0, 2, 3), keepdims=True)
    var = ((h - mean) ** 2).mean(axis=(0, 2, 3), keepdims=True)
    h = (h - mean) * jax.lax.rsqrt(var + eps) * params["gamma"].reshape(1, -1, 1, 1) \
        + params["beta"].reshape(1, -1, 1, 1)
    sc = conv(x, wsc, params["bsc"], stride, 0)
    return jax.nn.relu(h + sc)


# ---------------------------------- main -----------------------------------

if __name__ == "__main__":
    key = jax.random.PRNGKey(0)
    N, Cin, H, W = 2, 4, 15, 15          # odd spatial (see note above)
    Ch, Cout, K = 8, 4, 4
    ks = jax.random.split(key, 11)

    x = jax.random.normal(ks[0], (N, Cin, H, W), jnp.float32)
    params = dict(
        w1=0.3 * jax.random.normal(ks[1], (Cin, Ch), jnp.float32),
        b1=0.1 * jax.random.normal(ks[2], (Ch,), jnp.float32),
        w2=0.15 * jax.random.normal(ks[3], (K, K, Ch, Ch), jnp.float32),
        b2=0.1 * jax.random.normal(ks[4], (Ch,), jnp.float32),
        w3=0.3 * jax.random.normal(ks[5], (Ch, Cout), jnp.float32),
        b3=0.1 * jax.random.normal(ks[6], (Cout,), jnp.float32),
        wsc=0.3 * jax.random.normal(ks[7], (Cin, Cout), jnp.float32),
        bsc=0.1 * jax.random.normal(ks[8], (Cout,), jnp.float32),
        gamma=1.0 + 0.1 * jax.random.normal(ks[9], (Cout,), jnp.float32),
        beta=0.1 * jax.random.normal(ks[10], (Cout,), jnp.float32),
    )

    fwd = make_tsy_forward(params, (N, Cin, H, W))   # one-time prep (outside call path)
    y = fwd(x)
    jax.block_until_ready(y)

    y_ref = reference(x, params)
    assert y.shape == y_ref.shape == (N, Cout, 8, 8)
    err = float(jnp.max(jnp.abs(y - y_ref)))
    if err > 1e-3:
        raise AssertionError(f"mismatch vs reference: max abs err = {err}")
    print("KERNEL_OK")
</pallas_src>

<mosaic_0001>
module attributes {stable_mosaic.version = 11 : i64} {
  func.func @_fused_block_kernel(%arg0: memref<128x36xf32, #tpu.memory_space<vmem>>, %arg1: memref<128x72xf32, #tpu.memory_space<vmem>>, %arg2: memref<36x72xf32, #tpu.memory_space<vmem>>, %arg3: memref<1x72xf32, #tpu.memory_space<vmem>>, %arg4: memref<8x72x64xf32, #tpu.memory_space<vmem>>, %arg5: memref<1x64xf32, #tpu.memory_space<vmem>>, %arg6: memref<64x32xf32, #tpu.memory_space<vmem>>, %arg7: memref<1x32xf32, #tpu.memory_space<vmem>>, %arg8: memref<36x32xf32, #tpu.memory_space<vmem>>, %arg9: memref<1x32xf32, #tpu.memory_space<vmem>>, %arg10: memref<1x4xf32, #tpu.memory_space<vmem>>, %arg11: memref<1x4xf32, #tpu.memory_space<vmem>>, %arg12: memref<32x4xf32, #tpu.memory_space<vmem>>, %arg13: memref<4x32xf32, #tpu.memory_space<vmem>>, %arg14: memref<16x32xf32, #tpu.memory_space<vmem>>) attributes {dimension_semantics = [], scalar_prefetch = 0 : i64, scratch_operands = 0 : i64, tpu.core_type = #tpu.core_type<tc>} {
    %c0 = arith.constant 0 : index
    %c0_0 = arith.constant 0 : index
    %0 = vector.load %arg0[%c0, %c0_0] : memref<128x36xf32, #tpu.memory_space<vmem>>, vector<128x36xf32>
    %c0_1 = arith.constant 0 : index
    %c0_2 = arith.constant 0 : index
    %1 = vector.load %arg2[%c0_1, %c0_2] : memref<36x72xf32, #tpu.memory_space<vmem>>, vector<36x72xf32>
    %cst = arith.constant dense<0.000000e+00> : vector<128x72xf32>
    %2 = tpu.matmul %0, %1, %cst {dimension_numbers = #tpu.dot_dimension_numbers<[1], [0], [0], [1], [0, 0, 1, 1], [], []>} : vector<128x36xf32>, vector<36x72xf32>, vector<128x72xf32> -> vector<128x72xf32>
    %c0_3 = arith.constant 0 : index
    %c0_4 = arith.constant 0 : index
    %3 = vector.load %arg3[%c0_3, %c0_4] : memref<1x72xf32, #tpu.memory_space<vmem>>, vector<1x72xf32>
    %4 = vector.broadcast %3 : vector<1x72xf32> to vector<128x72xf32>
    %5 = arith.addf %2, %4 : vector<128x72xf32>
    %cst_5 = arith.constant 0.000000e+00 : f32
    %6 = vector.broadcast %cst_5 : f32 to vector<128x72xf32>
    %7 = arith.maximumf %5, %6 : vector<128x72xf32>
    %c0_6 = arith.constant 0 : index
    %c0_7 = arith.constant 0 : index
    %8 = vector.load %arg1[%c0_6, %c0_7] : memref<128x72xf32, #tpu.memory_space<vmem>>, vector<128x72xf32>
    %9 = arith.mulf %7, %8 : vector<128x72xf32>
    %10 = vector.extract_strided_slice %9 {offsets = [0, 0], sizes = [16, 72], strides = [1, 1]} : vector<128x72xf32> to vector<16x72xf32>
    %c0_8 = arith.constant 0 : index
    %c0_9 = arith.constant 0 : index
    %c0_10 = arith.constant 0 : index
    %11 = vector.load %arg4[%c0_8, %c0_9, %c0_10] : memref<8x72x64xf32, #tpu.memory_space<vmem>>, vector<1x72x64xf32>
    %12 = vector.shape_cast %11 : vector<1x72x64xf32> to vector<72x64xf32>
    %cst_11 = arith.constant dense<0.000000e+00> : vector<16x64xf32>
    %13 = tpu.matmul %10, %12, %cst_11 {dimension_numbers = #tpu.dot_dimension_numbers<[1], [0], [0], [1], [0, 0, 1, 1], [], []>} : vector<16x72xf32>, vector<72x64xf32>, vector<16x64xf32> -> vector<16x64xf32>
    %14 = vector.extract_strided_slice %9 {offsets = [16, 0], sizes = [16, 72], strides = [1, 1]} : vector<128x72xf32> to vector<16x72xf32>
    %c1 = arith.constant 1 : index
    %c0_12 = arith.constant 0 : index
    %c0_13 = arith.constant 0 : index
    %15 = vector.load %arg4[%c1, %c0_12, %c0_13] : memref<8x72x64xf32, #tpu.memory_space<vmem>>, vector<1x72x64xf32>
    %16 = vector.shape_cast %15 : vector<1x72x64xf32> to vector<72x64xf32>
    %cst_14 = arith.constant dense<0.000000e+00> : vector<16x64xf32>
    %17 = tpu.matmul %14, %16, %cst_14 {dimension_numbers = #tpu.dot_dimension_numbers<[1], [0], [0], [1], [0, 0, 1, 1], [], []>} : vector<16x72xf32>, vector<72x64xf32>, vector<16x64xf32> -> vector<16x64xf32>
    %18 = vector.extract_strided_slice %9 {offsets = [32, 0], sizes = [16, 72], strides = [1, 1]} : vector<128x72xf32> to vector<16x72xf32>
    %c2 = arith.constant 2 : index
    %c0_15 = arith.constant 0 : index
    %c0_16 = arith.constant 0 : index
    %19 = vector.load %arg4[%c2, %c0_15, %c0_16] : memref<8x72x64xf32, #tpu.memory_space<vmem>>, vector<1x72x64xf32>
    %20 = vector.shape_cast %19 : vector<1x72x64xf32> to vector<72x64xf32>
    %cst_17 = arith.constant dense<0.000000e+00> : vector<16x64xf32>
    %21 = tpu.matmul %18, %20, %cst_17 {dimension_numbers = #tpu.dot_dimension_numbers<[1], [0], [0], [1], [0, 0, 1, 1], [], []>} : vector<16x72xf32>, vector<72x64xf32>, vector<16x64xf32> -> vector<16x64xf32>
    %22 = vector.extract_strided_slice %9 {offsets = [48, 0], sizes = [16, 72], strides = [1, 1]} : vector<128x72xf32> to vector<16x72xf32>
    %c3 = arith.constant 3 : index
    %c0_18 = arith.constant 0 : index
    %c0_19 = arith.constant 0 : index
    %23 = vector.load %arg4[%c3, %c0_18, %c0_19] : memref<8x72x64xf32, #tpu.memory_space<vmem>>, vector<1x72x64xf32>
    %24 = vector.shape_cast %23 : vector<1x72x64xf32> to vector<72x64xf32>
    %cst_20 = arith.constant dense<0.000000e+00> : vector<16x64xf32>
    %25 = tpu.matmul %22, %24, %cst_20 {dimension_numbers = #tpu.dot_dimension_numbers<[1], [0], [0], [1], [0, 0, 1, 1], [], []>} : vector<16x72xf32>, vector<72x64xf32>, vector<16x64xf32> -> vector<16x64xf32>
    %26 = vector.extract_strided_slice %9 {offsets = [64, 0], sizes = [16, 72], strides = [1, 1]} : vector<128x72xf32> to vector<16x72xf32>
    %c4 = arith.constant 4 : index
    %c0_21 = arith.constant 0 : index
    %c0_22 = arith.constant 0 : index
    %27 = vector.load %arg4[%c4, %c0_21, %c0_22] : memref<8x72x64xf32, #tpu.memory_space<vmem>>, vector<1x72x64xf32>
    %28 = vector.shape_cast %27 : vector<1x72x64xf32> to vector<72x64xf32>
    %cst_23 = arith.constant dense<0.000000e+00> : vector<16x64xf32>
    %29 = tpu.matmul %26, %28, %cst_23 {dimension_numbers = #tpu.dot_dimension_numbers<[1], [0], [0], [1], [0, 0, 1, 1], [], []>} : vector<16x72xf32>, vector<72x64xf32>, vector<16x64xf32> -> vector<16x64xf32>
    %30 = vector.extract_strided_slice %9 {offsets = [80, 0], sizes = [16, 72], strides = [1, 1]} : vector<128x72xf32> to vector<16x72xf32>
    %c5 = arith.constant 5 : index
    %c0_24 = arith.constant 0 : index
    %c0_25 = arith.constant 0 : index
    %31 = vector.load %arg4[%c5, %c0_24, %c0_25] : memref<8x72x64xf32, #tpu.memory_space<vmem>>, vector<1x72x64xf32>
    %32 = vector.shape_cast %31 : vector<1x72x64xf32> to vector<72x64xf32>
    %cst_26 = arith.constant dense<0.000000e+00> : vector<16x64xf32>
    %33 = tpu.matmul %30, %32, %cst_26 {dimension_numbers = #tpu.dot_dimension_numbers<[1], [0], [0], [1], [0, 0, 1, 1], [], []>} : vector<16x72xf32>, vector<72x64xf32>, vector<16x64xf32> -> vector<16x64xf32>
    %34 = vector.extract_strided_slice %9 {offsets = [96, 0], sizes = [16, 72], strides = [1, 1]} : vector<128x72xf32> to vector<16x72xf32>
    %c6 = arith.constant 6 : index
    %c0_27 = arith.constant 0 : index
    %c0_28 = arith.constant 0 : index
    %35 = vector.load %arg4[%c6, %c0_27, %c0_28] : memref<8x72x64xf32, #tpu.memory_space<vmem>>, vector<1x72x64xf32>
    %36 = vector.shape_cast %35 : vector<1x72x64xf32> to vector<72x64xf32>
    %cst_29 = arith.constant dense<0.000000e+00> : vector<16x64xf32>
    %37 = tpu.matmul %34, %36, %cst_29 {dimension_numbers = #tpu.dot_dimension_numbers<[1], [0], [0], [1], [0, 0, 1, 1], [], []>} : vector<16x72xf32>, vector<72x64xf32>, vector<16x64xf32> -> vector<16x64xf32>
    %38 = vector.extract_strided_slice %9 {offsets = [112, 0], sizes = [16, 72], strides = [1, 1]} : vector<128x72xf32> to vector<16x72xf32>
    %c7 = arith.constant 7 : index
    %c0_30 = arith.constant 0 : index
    %c0_31 = arith.constant 0 : index
    %39 = vector.load %arg4[%c7, %c0_30, %c0_31] : memref<8x72x64xf32, #tpu.memory_space<vmem>>, vector<1x72x64xf32>
    %40 = vector.shape_cast %39 : vector<1x72x64xf32> to vector<72x64xf32>
    %cst_32 = arith.constant dense<0.000000e+00> : vector<16x64xf32>
    %41 = tpu.matmul %38, %40, %cst_32 {dimension_numbers = #tpu.dot_dimension_numbers<[1], [0], [0], [1], [0, 0, 1, 1], [], []>} : vector<16x72xf32>, vector<72x64xf32>, vector<16x64xf32> -> vector<16x64xf32>
    %42 = arith.addf %13, %17 : vector<16x64xf32>
    %43 = arith.addf %21, %25 : vector<16x64xf32>
    %44 = arith.addf %29, %33 : vector<16x64xf32>
    %45 = arith.addf %37, %41 : vector<16x64xf32>
    %46 = arith.addf %42, %43 : vector<16x64xf32>
    %47 = arith.addf %44, %45 : vector<16x64xf32>
    %48 = arith.addf %46, %47 : vector<16x64xf32>
    %c0_33 = arith.constant 0 : index
    %c0_34 = arith.constant 0 : index
    %49 = vector.load %arg5[%c0_33, %c0_34] : memref<1x64xf32, #tpu.memory_space<vmem>>, vector<1x64xf32>
    %50 = vector.broadcast %49 : vector<1x64xf32> to vector<16x64xf32>
    %51 = arith.addf %48, %50 : vector<16x64xf32>
    %cst_35 = arith.constant 0.000000e+00 : f32
    %52 = vector.broadcast %cst_35 : f32 to vector<16x64xf32>
    %53 = arith.maximumf %51, %52 : vector<16x64xf32>
    %c0_36 = arith.constant 0 : index
    %c0_37 = arith.constant 0 : index
    %54 = vector.load %arg6[%c0_36, %c0_37] : memref<64x32xf32, #tpu.memory_space<vmem>>, vector<64x32xf32>
    %cst_38 = arith.constant dense<0.000000e+00> : vector<16x32xf32>
    %55 = tpu.matmul %53, %54, %cst_38 {dimension_numbers = #tpu.dot_dimension_numbers<[1], [0], [0], [1], [0, 0, 1, 1], [], []>} : vector<16x64xf32>, vector<64x32xf32>, vector<16x32xf32> -> vector<16x32xf32>
    %c0_39 = arith.constant 0 : index
    %c0_40 = arith.constant 0 : index
    %56 = vector.load %arg7[%c0_39, %c0_40] : memref<1x32xf32, #tpu.memory_space<vmem>>, vector<1x32xf32>
    %57 = vector.broadcast %56 : vector<1x32xf32> to vector<16x32xf32>
    %58 = arith.addf %55, %57 : vector<16x32xf32>
    %59 = vector.extract_strided_slice %0 {offsets = [64, 0], sizes = [16, 36], strides = [1, 1]} : vector<128x36xf32> to vector<16x36xf32>
    %c0_41 = arith.constant 0 : index
    %c0_42 = arith.constant 0 : index
    %60 = vector.load %arg8[%c0_41, %c0_42] : memref<36x32xf32, #tpu.memory_space<vmem>>, vector<36x32xf32>
    %cst_43 = arith.constant dense<0.000000e+00> : vector<16x32xf32>
    %61 = tpu.matmul %59, %60, %cst_43 {dimension_numbers = #tpu.dot_dimension_numbers<[1], [0], [0], [1], [0, 0, 1, 1], [], []>} : vector<16x36xf32>, vector<36x32xf32>, vector<16x32xf32> -> vector<16x32xf32>
    %c0_44 = arith.constant 0 : index
    %c0_45 = arith.constant 0 : index
    %62 = vector.load %arg9[%c0_44, %c0_45] : memref<1x32xf32, #tpu.memory_space<vmem>>, vector<1x32xf32>
    %63 = vector.broadcast %62 : vector<1x32xf32> to vector<16x32xf32>
    %64 = arith.addf %61, %63 : vector<16x32xf32>
    %cst_46 = arith.constant dense<0.000000e+00> : vector<32xf32>
    %65 = vector.multi_reduction <add>, %58, %cst_46 [0] : vector<16x32xf32> to vector<32xf32>
    %66 = vector.shape_cast %65 : vector<32xf32> to vector<1x32xf32>
    %67 = arith.mulf %58, %58 : vector<16x32xf32>
    %cst_47 = arith.constant dense<0.000000e+00> : vector<32xf32>
    %68 = vector.multi_reduction <add>, %67, %cst_47 [0] : vector<16x32xf32> to vector<32xf32>
    %69 = vector.shape_cast %68 : vector<32xf32> to vector<1x32xf32>
    %c0_48 = arith.constant 0 : index
    %c0_49 = arith.constant 0 : index
    %70 = vector.load %arg12[%c0_48, %c0_49] : memref<32x4xf32, #tpu.memory_space<vmem>>, vector<32x4xf32>
    %cst_50 = arith.constant dense<0.000000e+00> : vector<1x4xf32>
    %71 = tpu.matmul %66, %70, %cst_50 {dimension_numbers = #tpu.dot_dimension_numbers<[1], [0], [0], [1], [0, 0, 1, 1], [], []>} : vector<1x32xf32>, vector<32x4xf32>, vector<1x4xf32> -> vector<1x4xf32>
    %cst_51 = arith.constant 7.812500e-03 : f32
    %72 = vector.broadcast %cst_51 : f32 to vector<1x4xf32>
    %73 = arith.mulf %71, %72 : vector<1x4xf32>
    %c0_52 = arith.constant 0 : index
    %c0_53 = arith.constant 0 : index
    %74 = vector.load %arg12[%c0_52, %c0_53] : memref<32x4xf32, #tpu.memory_space<vmem>>, vector<32x4xf32>
    %cst_54 = arith.constant dense<0.000000e+00> : vector<1x4xf32>
    %75 = tpu.matmul %69, %74, %cst_54 {dimension_numbers = #tpu.dot_dimension_numbers<[1], [0], [0], [1], [0, 0, 1, 1], [], []>} : vector<1x32xf32>, vector<32x4xf32>, vector<1x4xf32> -> vector<1x4xf32>
    %cst_55 = arith.constant 7.812500e-03 : f32
    %76 = vector.broadcast %cst_55 : f32 to vector<1x4xf32>
    %77 = arith.mulf %75, %76 : vector<1x4xf32>
    %78 = arith.mulf %73, %73 : vector<1x4xf32>
    %79 = arith.subf %77, %78 : vector<1x4xf32>
    %cst_56 = arith.constant 0.000000e+00 : f32
    %80 = vector.broadcast %cst_56 : f32 to vector<1x4xf32>
    %81 = arith.maximumf %79, %80 : vector<1x4xf32>
    %cst_57 = arith.constant 9.99999974E-6 : f32
    %82 = vector.broadcast %cst_57 : f32 to vector<1x4xf32>
    %83 = arith.addf %81, %82 : vector<1x4xf32>
    %84 = math.rsqrt %83 : vector<1x4xf32>
    %c0_58 = arith.constant 0 : index
    %c0_59 = arith.constant 0 : index
    %85 = vector.load %arg10[%c0_58, %c0_59] : memref<1x4xf32, #tpu.memory_space<vmem>>, vector<1x4xf32>
    %86 = arith.mulf %85, %84 : vector<1x4xf32>
    %c0_60 = arith.constant 0 : index
    %c0_61 = arith.constant 0 : index
    %87 = vector.load %arg11[%c0_60, %c0_61] : memref<1x4xf32, #tpu.memory_space<vmem>>, vector<1x4xf32>
    %88 = arith.mulf %73, %86 : vector<1x4xf32>
    %89 = arith.subf %87, %88 : vector<1x4xf32>
    %c0_62 = arith.constant 0 : index
    %c0_63 = arith.constant 0 : index
    %90 = vector.load %arg13[%c0_62, %c0_63] : memref<4x32xf32, #tpu.memory_space<vmem>>, vector<4x32xf32>
    %cst_64 = arith.constant dense<0.000000e+00> : vector<1x32xf32>
    %91 = tpu.matmul %86, %90, %cst_64 {dimension_numbers = #tpu.dot_dimension_numbers<[1], [0], [0], [1], [0, 0, 1, 1], [], []>} : vector<1x4xf32>, vector<4x32xf32>, vector<1x32xf32> -> vector<1x32xf32>
    %c0_65 = arith.constant 0 : index
    %c0_66 = arith.constant 0 : index
    %92 = vector.load %arg13[%c0_65, %c0_66] : memref<4x32xf32, #tpu.memory_space<vmem>>, vector<4x32xf32>
    %cst_67 = arith.constant dense<0.000000e+00> : vector<1x32xf32>
    %93 = tpu.matmul %89, %92, %cst_67 {dimension_numbers = #tpu.dot_dimension_numbers<[1], [0], [0], [1], [0, 0, 1, 1], [], []>} : vector<1x4xf32>, vector<4x32xf32>, vector<1x32xf32> -> vector<1x32xf32>
    %94 = vector.broadcast %91 : vector<1x32xf32> to vector<16x32xf32>
    %95 = arith.mulf %58, %94 : vector<16x32xf32>
    %96 = vector.broadcast %93 : vector<1x32xf32> to vector<16x32xf32>
    %97 = arith.addf %95, %96 : vector<16x32xf32>
    %98 = arith.addf %97, %64 : vector<16x32xf32>
    %cst_68 = arith.constant 0.000000e+00 : f32
    %99 = vector.broadcast %cst_68 : f32 to vector<16x32xf32>
    %100 = arith.maximumf %98, %99 : vector<16x32xf32>
    %c0_69 = arith.constant 0 : index
    %c0_70 = arith.constant 0 : index
    %101 = vector.load %arg14[%c0_69, %c0_70] : memref<16x32xf32, #tpu.memory_space<vmem>>, vector<16x32xf32>
    tpu.vector_store %arg14[%c0_69, %c0_70], %100 {strides = array<i32>} : memref<16x32xf32, #tpu.memory_space<vmem>>, vector<16x32xf32>,
    return
  }
}

</mosaic_0001>

<llo_original>
// kernel: forward.1
$region0: #{forward.1}
  #allocation0 [shape = 'u32[]', space=smem, size = 0x4, offset = 0x4, fixed_abs, tag = 'smem constant byte address 0x4 - core index']
  #allocation1 [shape = 'u32[144,128]{1,0:T(1,128)}', space=vmem, size = 0x12000, scoped, tag = 'internal scratch']
  %s0 = inlined_call_operand.vmem [shape: f32[128,36], index: 0, kind: input, shape index: {}]
  %s1 = inlined_call_operand.vmem [shape: f32[128,72], index: 1, kind: input, shape index: {}]
  %s2 = inlined_call_operand.vmem [shape: f32[36,72], index: 2, kind: input, shape index: {}]
  %s3 = inlined_call_operand.vmem [shape: f32[1,72], index: 3, kind: input, shape index: {}]
  %s4 = inlined_call_operand.vmem [shape: f32[8,72,64], index: 4, kind: input, shape index: {}]
  %s5 = inlined_call_operand.vmem [shape: f32[1,64], index: 5, kind: input, shape index: {}]
  %s6 = inlined_call_operand.vmem [shape: f32[64,32], index: 6, kind: input, shape index: {}]
  %s7 = inlined_call_operand.vmem [shape: f32[1,32], index: 7, kind: input, shape index: {}]
  %s8 = inlined_call_operand.vmem [shape: f32[36,32], index: 8, kind: input, shape index: {}]
  %s9 = inlined_call_operand.vmem [shape: f32[1,32], index: 9, kind: input, shape index: {}]
  %s10 = inlined_call_operand.vmem [shape: f32[1,4], index: 10, kind: input, shape index: {}]
  %s11 = inlined_call_operand.vmem [shape: f32[1,4], index: 11, kind: input, shape index: {}]
  %s12 = inlined_call_operand.vmem [shape: f32[32,4], index: 12, kind: input, shape index: {}]
  %s13 = inlined_call_operand.vmem [shape: f32[4,32], index: 13, kind: input, shape index: {}]
  %s14 = inlined_call_operand.vmem [shape: f32[16,32], index: 14, kind: output, shape index: {}]
  %s15 = sld [smem:[#allocation0]]
  $region66: #{forward.1} parent=0
    _
  %s17 = ssub.s32 1, %s15
  %s18 = scalar_select 0, %s17, %s15
  // Predicated region
  $region2: #{forward.1} parent=0 // pred_check
    _
  $region3: #{forward.1} parent=0 // pred_check_branch
    %20 = sbr.rel (0) target = $region5
  $region4: #{forward.1} parent=0 // pred_region
    _
  $region5: #{forward.1} parent=0 // pred_fallthru
    _
  // Predicated region
  $region6: #{forward.1} parent=0 // pred_check
    _
  $region7: #{forward.1} parent=0 // pred_check_branch
    %22 = sbr.rel (0) target = $region9
  $region8: #{forward.1} parent=0 // pred_region
    _
  $region9: #{forward.1} parent=0 // pred_fallthru
    _
  // Predicated region
  $region10: #{forward.1} parent=0 // pred_check
    _
  $region11: #{forward.1} parent=0 // pred_check_branch
    %24 = sbr.rel (0) target = $region13
  $region12: #{forward.1} parent=0 // pred_region
    _
  $region13: #{forward.1} parent=0 // pred_fallthru
    _
  // Predicated region
  $region14: #{forward.1} parent=0 // pred_check
    _
  $region15: #{forward.1} parent=0 // pred_check_branch
    %26 = sbr.rel (0) target = $region17
  $region16: #{forward.1} parent=0 // pred_region
    _
  $region17: #{forward.1} parent=0 // pred_fallthru
    _
  // Predicated region
  $region18: #{forward.1} parent=0 // pred_check
    _
  $region19: #{forward.1} parent=0 // pred_check_branch
    %28 = sbr.rel (0) target = $region21
  $region20: #{forward.1} parent=0 // pred_region
    _
  $region21: #{forward.1} parent=0 // pred_fallthru
    _
  // Predicated region
  $region22: #{forward.1} parent=0 // pred_check
    _
  $region23: #{forward.1} parent=0 // pred_check_branch
    %30 = sbr.rel (0) target = $region25
  $region24: #{forward.1} parent=0 // pred_region
    _
  $region25: #{forward.1} parent=0 // pred_fallthru
    _
  // Predicated region
  $region26: #{forward.1} parent=0 // pred_check
    _
  $region27: #{forward.1} parent=0 // pred_check_branch
    %32 = sbr.rel (0) target = $region29
  $region28: #{forward.1} parent=0 // pred_region
    _
  $region29: #{forward.1} parent=0 // pred_fallthru
    _
  // Predicated region
  $region30: #{forward.1} parent=0 // pred_check
    _
  $region31: #{forward.1} parent=0 // pred_check_branch
    %34 = sbr.rel (0) target = $region33
  $region32: #{forward.1} parent=0 // pred_region
    _
  $region33: #{forward.1} parent=0 // pred_fallthru
    _
  // Predicated region
  $region34: #{forward.1} parent=0 // pred_check
    _
  $region35: #{forward.1} parent=0 // pred_check_branch
    %36 = sbr.rel (0) target = $region37
  $region36: #{forward.1} parent=0 // pred_region
    _
  $region37: #{forward.1} parent=0 // pred_fallthru
    _
  // Predicated region
  $region38: #{forward.1} parent=0 // pred_check
    _
  $region39: #{forward.1} parent=0 // pred_check_branch
    %38 = sbr.rel (0) target = $region41
  $region40: #{forward.1} parent=0 // pred_region
    _
  $region41: #{forward.1} parent=0 // pred_fallthru
    _
  // Predicated region
  $region42: #{forward.1} parent=0 // pred_check
    _
  $region43: #{forward.1} parent=0 // pred_check_branch
    %40 = sbr.rel (0) target = $region45
  $region44: #{forward.1} parent=0 // pred_region
    _
  $region45: #{forward.1} parent=0 // pred_fallthru
    _
  // Predicated region
  $region46: #{forward.1} parent=0 // pred_check
    _
  $region47: #{forward.1} parent=0 // pred_check_branch
    %42 = sbr.rel (0) target = $region49
  $region48: #{forward.1} parent=0 // pred_region
    _
  $region49: #{forward.1} parent=0 // pred_fallthru
    _
  // Predicated region
  $region50: #{forward.1} parent=0 // pred_check
    _
  $region51: #{forward.1} parent=0 // pred_check_branch
    %44 = sbr.rel (0) target = $region53
  $region52: #{forward.1} parent=0 // pred_region
    _
  $region53: #{forward.1} parent=0 // pred_fallthru
    _
  // Predicated region
  $region54: #{forward.1} parent=0 // pred_check
    _
  $region55: #{forward.1} parent=0 // pred_check_branch
    %46 = sbr.rel (0) target = $region57
  $region56: #{forward.1} parent=0 // pred_region
    _
  $region57: #{forward.1} parent=0 // pred_fallthru
    _
  %v47 = vld [vmem:[%s0] sm:$0xff]
  %v48 = vld [vmem:[%s0 + $0x8] sm:$0xff]
  %v49 = vld [vmem:[%s0 + $0x10] sm:$0xff]
  %v50 = vld [vmem:[%s0 + $0x18] sm:$0xff]
  %v51 = vld [vmem:[%s0 + $0x20] sm:$0xff]
  %v52 = vld [vmem:[%s0 + $0x28] sm:$0xff]
  %v53 = vld [vmem:[%s0 + $0x30] sm:$0xff]
  %v54 = vld [vmem:[%s0 + $0x38] sm:$0xff]
  %v55 = vld [vmem:[%s0 + $0x40] sm:$0xff]
  %v56 = vld [vmem:[%s0 + $0x48] sm:$0xff]
  %v57 = vld [vmem:[%s0 + $0x50] sm:$0xff]
  %v58 = vld [vmem:[%s0 + $0x58] sm:$0xff]
  %v59 = vld [vmem:[%s0 + $0x60] sm:$0xff]
  %v60 = vld [vmem:[%s0 + $0x68] sm:$0xff]
  %v61 = vld [vmem:[%s0 + $0x70] sm:$0xff]
  %v62 = vld [vmem:[%s0 + $0x78] sm:$0xff]
  %v63 = vld [vmem:[%s2] sm:$0xff]
  %v64 = vld [vmem:[%s2 + $0x8] sm:$0xff]
  %v65 = vld [vmem:[%s2 + $0x10] sm:$0xff]
  %v66 = vld [vmem:[%s2 + $0x18] sm:$0xff]
  %v67 = vld [vmem:[%s2 + $0x20] sm:$0xf]
  %v68 = vld [vmem:[%s3] sm:$0x1]
  %v70 = vlaneseq
  %v71 = vshrl.u32 %v70, 7
  %v72 = vsub.s32 0, %v71
  %v73 = vrot.slane %v68, %v72
  %vm75 = vcmask 293888
  %v77 = vsel %vm75, %v47, 0
  %v80 = vsel %vm75, %v48, 0
  %v83 = vsel %vm75, %v49, 0
  %v86 = vsel %vm75, %v50, 0
  %v89 = vsel %vm75, %v51, 0
  %v92 = vsel %vm75, %v52, 0
  %v95 = vsel %vm75, %v53, 0
  %v98 = vsel %vm75, %v54, 0
  %v101 = vsel %vm75, %v55, 0
  %v104 = vsel %vm75, %v56, 0
  %v107 = vsel %vm75, %v57, 0
  %v110 = vsel %vm75, %v58, 0
  %v113 = vsel %vm75, %v59, 0
  %v116 = vsel %vm75, %v60, 0
  %v119 = vsel %vm75, %v61, 0
  %v122 = vsel %vm75, %v62, 0
  %vm124 = vcmask 1043456
  %v126 = vsel %vm124, %v67, 0
  %128 = vmatprep.subr.mxu0 0.0
  %129 = vmatpush1.msra.mxu0 0.0
  %130 = vmatprep.subr.mxu0 0.0
  %131 = vmatpush1.msra.mxu0 0.0
  %132 = vmatprep.subr.mxu0 0.0
  %133 = vmatpush1.msra.mxu0 0.0
  %134 = vmatprep.subr.mxu0 0.0
  %135 = vmatpush1.msra.mxu0 0.0
  %136 = vmatprep.subr.mxu0 0.0
  %137 = vmatpush1.msra.mxu0 0.0
  %138 = vmatprep.subr.mxu0 0.0
  %139 = vmatpush1.msra.mxu0 0.0
  %140 = vmatprep.subr.mxu0 0.0
  %141 = vmatpush1.msra.mxu0 0.0
  %142 = vmatprep.subr.mxu0 0.0
  %143 = vmatpush1.msra.mxu0 0.0
  %144 = vmatprep.subr.mxu0 0.0
  %145 = vmatpush1.msra.mxu0 0.0
  %146 = vmatprep.subr.mxu0 0.0
  %147 = vmatpush1.msra.mxu0 0.0
  %148 = vmatprep.subr.mxu0 0.0
  %149 = vmatpush1.msra.mxu0 0.0
  %150 = vmatprep.subr.mxu0 0.0
  %151 = vmatpush1.msra.mxu0 %v126
  %152 = vmatprep.subr.mxu0 0.0
  %153 = vmatpush1.msra.mxu0 %v66
  %154 = vmatprep.subr.mxu0 0.0
  %155 = vmatpush1.msra.mxu0 %v65
  %156 = vmatprep.subr.mxu0 0.0
  %157 = vmatpush1.msra.mxu0 %v64
  %158 = vmatprep.subr.mxu0 0.0
  %159 = vmatpush1.msra.mxu0 %v63
  %160 = vmatprep.subr.mxu0 0.0
  %161 = vmatpush2.msra.mxu0 0.0
  %162 = vmatprep.subr.mxu0 0.0
  %163 = vmatpush2.msra.mxu0 0.0
  %164 = vmatprep.subr.mxu0 0.0
  %165 = vmatpush2.msra.mxu0 0.0
  %166 = vmatprep.subr.mxu0 0.0
  %167 = vmatpush2.msra.mxu0 0.0
  %168 = vmatprep.subr.mxu0 0.0
  %169 = vmatpush2.msra.mxu0 0.0
  %170 = vmatprep.subr.mxu0 0.0
  %171 = vmatpush2.msra.mxu0 0.0
  %172 = vmatprep.subr.mxu0 0.0
  %173 = vmatpush2.msra.mxu0 0.0
  %174 = vmatprep.subr.mxu0 0.0
  %175 = vmatpush2.msra.mxu0 0.0
  %176 = vmatprep.subr.mxu0 0.0
  %177 = vmatpush2.msra.mxu0 0.0
  %178 = vmatprep.subr.mxu0 0.0
  %179 = vmatpush2.msra.mxu0 0.0
  %180 = vmatprep.subr.mxu0 0.0
  %181 = vmatpush2.msra.mxu0 0.0
  %182 = vmatprep.subr.mxu0 0.0
  %183 = vmatpush2.msra.mxu0 0.0
  %184 = vmatprep.subr.mxu0 0.0
  %185 = vmatpush2.msra.mxu0 0.0
  %186 = vmatprep.subr.mxu0 0.0
  %187 = vmatpush2.msra.mxu0 0.0
  %188 = vmatprep.subr.mxu0 0.0
  %189 = vmatpush2.msra.mxu0 0.0
  %190 = vmatprep.subr.mxu0 0.0
  %191 = vmatpush2.msra.mxu0 0.0
  %192 = vmatprep.mubr.f32.mxu0 0.0
  %193 = vmatmul.mubr.f32.gmra.mxu0 %v77
  %v194 = vpop.f32.mrf.mxu0
  %v195 = vadd.f32 %v73, %v194
  %v196 = vpop.f32.mrf.mxu0
  %197 = vmatprep.mubr.f32.mxu0 0.0
  %198 = vmatmul.mubr.f32.gmra.mxu0 %v80
  %v199 = vpop.f32.mrf.mxu0
  %v200 = vadd.f32 %v73, %v199
  %v201 = vpop.f32.mrf.mxu0
  %202 = vmatprep.mubr.f32.mxu0 0.0
  %203 = vmatmul.mubr.f32.gmra.mxu0 %v83
  %v204 = vpop.f32.mrf.mxu0
  %v205 = vadd.f32 %v73, %v204
  %v206 = vpop.f32.mrf.mxu0
  %207 = vmatprep.mubr.f32.mxu0 0.0
  %208 = vmatmul.mubr.f32.gmra.mxu0 %v86
  %v209 = vpop.f32.mrf.mxu0
  %v210 = vadd.f32 %v73, %v209
  %v211 = vpop.f32.mrf.mxu0
  %212 = vmatprep.mubr.f32.mxu0 0.0
  %213 = vmatmul.mubr.f32.gmra.mxu0 %v89
  %v214 = vpop.f32.mrf.mxu0
  %v215 = vadd.f32 %v73, %v214
  %v216 = vpop.f32.mrf.mxu0
  %217 = vmatprep.mubr.f32.mxu0 0.0
  %218 = vmatmul.mubr.f32.gmra.mxu0 %v92
  %v219 = vpop.f32.mrf.mxu0
  %v220 = vadd.f32 %v73, %v219
  %v221 = vpop.f32.mrf.mxu0
  %222 = vmatprep.mubr.f32.mxu0 0.0
  %223 = vmatmul.mubr.f32.gmra.mxu0 %v95
  %v224 = vpop.f32.mrf.mxu0
  %v225 = vadd.f32 %v73, %v224
  %v226 = vpop.f32.mrf.mxu0
  %227 = vmatprep.mubr.f32.mxu0 0.0
  %228 = vmatmul.mubr.f32.gmra.mxu0 %v98
  %v229 = vpop.f32.mrf.mxu0
  %v230 = vadd.f32 %v73, %v229
  %v231 = vpop.f32.mrf.mxu0
  %232 = vmatprep.mubr.f32.mxu0 0.0
  %233 = vmatmul.mubr.f32.gmra.mxu0 %v101
  %v234 = vpop.f32.mrf.mxu0
  %v235 = vadd.f32 %v73, %v234
  %v236 = vpop.f32.mrf.mxu0
  %237 = vmatprep.mubr.f32.mxu0 0.0
  %238 = vmatmul.mubr.f32.gmra.mxu0 %v104
  %v239 = vpop.f32.mrf.mxu0
  %v240 = vadd.f32 %v73, %v239
  %v241 = vpop.f32.mrf.mxu0
  %242 = vmatprep.mubr.f32.mxu0 0.0
  %243 = vmatmul.mubr.f32.gmra.mxu0 %v107
  %v244 = vpop.f32.mrf.mxu0
  %v245 = vadd.f32 %v73, %v244
  %v246 = vpop.f32.mrf.mxu0
  %247 = vmatprep.mubr.f32.mxu0 0.0
  %248 = vmatmul.mubr.f32.gmra.mxu0 %v110
  %v249 = vpop.f32.mrf.mxu0
  %v250 = vadd.f32 %v73, %v249
  %v251 = vpop.f32.mrf.mxu0
  %252 = vmatprep.mubr.f32.mxu0 0.0
  %253 = vmatmul.mubr.f32.gmra.mxu0 %v113
  %v254 = vpop.f32.mrf.mxu0
  %v255 = vadd.f32 %v73, %v254
  %v256 = vpop.f32.mrf.mxu0
  %257 = vmatprep.mubr.f32.mxu0 0.0
  %258 = vmatmul.mubr.f32.gmra.mxu0 %v116
  %v259 = vpop.f32.mrf.mxu0
  %v260 = vadd.f32 %v73, %v259
  %v261 = vpop.f32.mrf.mxu0
  %262 = vmatprep.mubr.f32.mxu0 0.0
  %263 = vmatmul.mubr.f32.gmra.mxu0 %v119
  %v264 = vpop.f32.mrf.mxu0
  %v265 = vadd.f32 %v73, %v264
  %v266 = vpop.f32.mrf.mxu0
  %267 = vmatprep.mubr.f32.mxu0 0.0
  %268 = vmatmul.mubr.f32.gmra.mxu0 %v122
  %v269 = vpop.f32.mrf.mxu0
  %v270 = vadd.f32 %v73, %v269
  %v271 = vpop.f32.mrf.mxu0
  %272 = vdwg.mxu0
  %v273 = vmax.f32 %v195, 0.0
  %v274 = vmax.f32 %v200, 0.0
  %v275 = vmax.f32 %v205, 0.0
  %v276 = vmax.f32 %v210, 0.0
  %v277 = vmax.f32 %v215, 0.0
  %v278 = vmax.f32 %v220, 0.0
  %v279 = vmax.f32 %v225, 0.0
  %v280 = vmax.f32 %v230, 0.0
  %v281 = vmax.f32 %v235, 0.0
  %v282 = vmax.f32 %v240, 0.0
  %v283 = vmax.f32 %v245, 0.0
  %v284 = vmax.f32 %v250, 0.0
  %v285 = vmax.f32 %v255, 0.0
  %v286 = vmax.f32 %v260, 0.0
  %v287 = vmax.f32 %v265, 0.0
  %v288 = vmax.f32 %v270, 0.0
  %v289 = vld [vmem:[%s1] sm:$0xff]
  %v290 = vld [vmem:[%s1 + $0x8] sm:$0xff]
  %v291 = vld [vmem:[%s1 + $0x10] sm:$0xff]
  %v292 = vld [vmem:[%s1 + $0x18] sm:$0xff]
  %v293 = vld [vmem:[%s1 + $0x20] sm:$0xff]
  %v294 = vld [vmem:[%s1 + $0x28] sm:$0xff]
  %v295 = vld [vmem:[%s1 + $0x30] sm:$0xff]
  %v296 = vld [vmem:[%s1 + $0x38] sm:$0xff]
  %v297 = vld [vmem:[%s1 + $0x40] sm:$0xff]
  %v298 = vld [vmem:[%s1 + $0x48] sm:$0xff]
  %v299 = vld [vmem:[%s1 + $0x50] sm:$0xff]
  %v300 = vld [vmem:[%s1 + $0x58] sm:$0xff]
  %v301 = vld [vmem:[%s1 + $0x60] sm:$0xff]
  %v302 = vld [vmem:[%s1 + $0x68] sm:$0xff]
  %v303 = vld [vmem:[%s1 + $0x70] sm:$0xff]
  %v304 = vld [vmem:[%s1 + $0x78] sm:$0xff]
  %v305 = vmul.f32 %v273, %v289
  %v306 = vmul.f32 %v274, %v290
  %v307 = vmul.f32 %v275, %v291
  %v308 = vmul.f32 %v276, %v292
  %v309 = vmul.f32 %v277, %v293
  %v310 = vmul.f32 %v278, %v294
  %v311 = vmul.f32 %v279, %v295
  %v312 = vmul.f32 %v280, %v296
  %v313 = vmul.f32 %v281, %v297
  %v314 = vmul.f32 %v282, %v298
  %v315 = vmul.f32 %v283, %v299
  %v316 = vmul.f32 %v284, %v300
  %v317 = vmul.f32 %v285, %v301
  %v318 = vmul.f32 %v286, %v302
  %v319 = vmul.f32 %v287, %v303
  %v320 = vmul.f32 %v288, %v304
  %v321 = vld [vmem:[%s4] sm:$0xff]
  %v322 = vld [vmem:[%s4 + $0x8] sm:$0xff]
  %v323 = vld [vmem:[%s4 + $0x10] sm:$0xff]
  %v324 = vld [vmem:[%s4 + $0x18] sm:$0xff]
  %v325 = vld [vmem:[%s4 + $0x20] sm:$0xff]
  %v326 = vld [vmem:[%s4 + $0x28] sm:$0xff]
  %v327 = vld [vmem:[%s4 + $0x30] sm:$0xff]
  %v328 = vld [vmem:[%s4 + $0x38] sm:$0xff]
  %v329 = vld [vmem:[%s4 + $0x40] sm:$0xff]
  %s330 = scalar_lea.vmem %s4, 72
  %v331 = vld [vmem:[%s330] sm:$0xff]
  %v332 = vld [vmem:[%s330 + $0x8] sm:$0xff]
  %v333 = vld [vmem:[%s330 + $0x10] sm:$0xff]
  %v334 = vld [vmem:[%s330 + $0x18] sm:$0xff]
  %v335 = vld [vmem:[%s330 + $0x20] sm:$0xff]
  %v336 = vld [vmem:[%s330 + $0x28] sm:$0xff]
  %v337 = vld [vmem:[%s330 + $0x30] sm:$0xff]
  %v338 = vld [vmem:[%s330 + $0x38] sm:$0xff]
  %v339 = vld [vmem:[%s330 + $0x40] sm:$0xff]
  %vm340 = vcmask 588800
  %v342 = vsel %vm340, %v307, 0
  %v345 = vsel %vm340, %v308, 0
  %347 = vmatprep.subr.mxu0 0.0
  %348 = vmatpush1.msra.mxu0 0.0
  %349 = vmatprep.subr.mxu0 0.0
  %350 = vmatpush1.msra.mxu0 0.0
  %351 = vmatprep.subr.mxu0 0.0
  %352 = vmatpush1.msra.mxu0 0.0
  %353 = vmatprep.subr.mxu0 0.0
  %354 = vmatpush1.msra.mxu0 0.0
  %355 = vmatprep.subr.mxu0 0.0
  %356 = vmatpush1.msra.mxu0 0.0
  %357 = vmatprep.subr.mxu0 0.0
  %358 = vmatpush1.msra.mxu0 0.0
  %359 = vmatprep.subr.mxu0 0.0
  %360 = vmatpush1.msra.mxu0 0.0
  %361 = vmatprep.subr.mxu0 0.0
  %362 = vmatpush1.msra.mxu0 %v339
  %363 = vmatprep.subr.mxu0 0.0
  %364 = vmatpush1.msra.mxu0 %v338
  %365 = vmatprep.subr.mxu0 0.0
  %366 = vmatpush1.msra.mxu0 %v337
  %367 = vmatprep.subr.mxu0 0.0
  %368 = vmatpush1.msra.mxu0 %v336
  %369 = vmatprep.subr.mxu0 0.0
  %370 = vmatpush1.msra.mxu0 %v335
  %371 = vmatprep.subr.mxu0 0.0
  %372 = vmatpush1.msra.mxu0 %v334
  %373 = vmatprep.subr.mxu0 0.0
  %374 = vmatpush1.msra.mxu0 %v333
  %375 = vmatprep.subr.mxu0 0.0
  %376 = vmatpush1.msra.mxu0 %v332
  %377 = vmatprep.subr.mxu0 0.0
  %378 = vmatpush1.msra.mxu0 %v331
  %379 = vmatprep.subr.mxu0 0.0
  %380 = vmatpush2.msra.mxu0 0.0
  %381 = vmatprep.subr.mxu0 0.0
  %382 = vmatpush2.msra.mxu0 0.0
  %383 = vmatprep.subr.mxu0 0.0
  %384 = vmatpush2.msra.mxu0 0.0
  %385 = vmatprep.subr.mxu0 0.0
  %386 = vmatpush2.msra.mxu0 0.0
  %387 = vmatprep.subr.mxu0 0.0
  %388 = vmatpush2.msra.mxu0 0.0
  %389 = vmatprep.subr.mxu0 0.0
  %390 = vmatpush2.msra.mxu0 0.0
  %391 = vmatprep.subr.mxu0 0.0
  %392 = vmatpush2.msra.mxu0 0.0
  %393 = vmatprep.subr.mxu0 0.0
  %394 = vmatpush2.msra.mxu0 0.0
  %395 = vmatprep.subr.mxu0 0.0
  %396 = vmatpush2.msra.mxu0 0.0
  %397 = vmatprep.subr.mxu0 0.0
  %398 = vmatpush2.msra.mxu0 0.0
  %399 = vmatprep.subr.mxu0 0.0
  %400 = vmatpush2.msra.mxu0 0.0
  %401 = vmatprep.subr.mxu0 0.0
  %402 = vmatpush2.msra.mxu0 0.0
  %403 = vmatprep.subr.mxu0 0.0
  %404 = vmatpush2.msra.mxu0 0.0
  %405 = vmatprep.subr.mxu0 0.0
  %406 = vmatpush2.msra.mxu0 0.0
  %407 = vmatprep.subr.mxu0 0.0
  %408 = vmatpush2.msra.mxu0 0.0
  %409 = vmatprep.subr.mxu0 0.0
  %410 = vmatpush2.msra.mxu0 0.0
  %411 = vmatprep.mubr.f32.mxu0 0.0
  %412 = vmatmul.mubr.f32.gmra.mxu0 %v342
  %v413 = vpop.f32.mrf.mxu0
  %v414 = vadd.f32 0.0, %v413
  %v415 = vpop.f32.mrf.mxu0
  %416 = vmatprep.mubr.f32.mxu0 0.0
  %417 = vmatmul.mubr.f32.gmra.mxu0 %v345
  %v418 = vpop.f32.mrf.mxu0
  %v419 = vadd.f32 0.0, %v418
  %v420 = vpop.f32.mrf.mxu0
  %421 = vdwg.mxu0
  %s422 = scalar_lea.vmem %s4, 144
  %v423 = vld [vmem:[%s422] sm:$0xff]
  %v424 = vld [vmem:[%s422 + $0x8] sm:$0xff]
  %v425 = vld [vmem:[%s422 + $0x10] sm:$0xff]
  %v426 = vld [vmem:[%s422 + $0x18] sm:$0xff]
  %v427 = vld [vmem:[%s422 + $0x20] sm:$0xff]
  %v428 = vld [vmem:[%s422 + $0x28] sm:$0xff]
  %v429 = vld [vmem:[%s422 + $0x30] sm:$0xff]
  %v430 = vld [vmem:[%s422 + $0x38] sm:$0xff]
  %v431 = vld [vmem:[%s422 + $0x40] sm:$0xff]
  %s432 = scalar_lea.vmem %s4, 216
  %v433 = vld [vmem:[%s432] sm:$0xff]
  %v434 = vld [vmem:[%s432 + $0x8] sm:$0xff]
  %v435 = vld [vmem:[%s432 + $0x10] sm:$0xff]
  %v436 = vld [vmem:[%s432 + $0x18] sm:$0xff]
  %v437 = vld [vmem:[%s432 + $0x20] sm:$0xff]
  %v438 = vld [vmem:[%s432 + $0x28] sm:$0xff]
  %v439 = vld [vmem:[%s432 + $0x30] sm:$0xff]
  %v440 = vld [vmem:[%s432 + $0x38] sm:$0xff]
  %v441 = vld [vmem:[%s432 + $0x40] sm:$0xff]
  %v443 = vsel %vm340, %v311, 0
  %v446 = vsel %vm340, %v312, 0
  %448 = vmatprep.subr.mxu0 0.0
  %449 = vmatpush1.msra.mxu0 0.0
  %450 = vmatprep.subr.mxu0 0.0
  %451 = vmatpush1.msra.mxu0 0.0
  %452 = vmatprep.subr.mxu0 0.0
  %453 = vmatpush1.msra.mxu0 0.0
  %454 = vmatprep.subr.mxu0 0.0
  %455 = vmatpush1.msra.mxu0 0.0
  %456 = vmatprep.subr.mxu0 0.0
  %457 = vmatpush1.msra.mxu0 0.0
  %458 = vmatprep.subr.mxu0 0.0
  %459 = vmatpush1.msra.mxu0 0.0
  %460 = vmatprep.subr.mxu0 0.0
  %461 = vmatpush1.msra.mxu0 0.0
  %462 = vmatprep.subr.mxu0 0.0
  %463 = vmatpush1.msra.mxu0 %v441
  %464 = vmatprep.subr.mxu0 0.0
  %465 = vmatpush1.msra.mxu0 %v440
  %466 = vmatprep.subr.mxu0 0.0
  %467 = vmatpush1.msra.mxu0 %v439
  %468 = vmatprep.subr.mxu0 0.0
  %469 = vmatpush1.msra.mxu0 %v438
  %470 = vmatprep.subr.mxu0 0.0
  %471 = vmatpush1.msra.mxu0 %v437
  %472 = vmatprep.subr.mxu0 0.0
  %473 = vmatpush1.msra.mxu0 %v436
  %474 = vmatprep.subr.mxu0 0.0
  %475 = vmatpush1.msra.mxu0 %v435
  %476 = vmatprep.subr.mxu0 0.0
  %477 = vmatpush1.msra.mxu0 %v434
  %478 = vmatprep.subr.mxu0 0.0
  %479 = vmatpush1.msra.mxu0 %v433
  %480 = vmatprep.subr.mxu0 0.0
  %481 = vmatpush2.msra.mxu0 0.0
  %482 = vmatprep.subr.mxu0 0.0
  %483 = vmatpush2.msra.mxu0 0.0
  %484 = vmatprep.subr.mxu0 0.0
  %485 = vmatpush2.msra.mxu0 0.0
  %486 = vmatprep.subr.mxu0 0.0
  %487 = vmatpush2.msra.mxu0 0.0
  %488 = vmatprep.subr.mxu0 0.0
  %489 = vmatpush2.msra.mxu0 0.0
  %490 = vmatprep.subr.mxu0 0.0
  %491 = vmatpush2.msra.mxu0 0.0
  %492 = vmatprep.subr.mxu0 0.0
  %493 = vmatpush2.msra.mxu0 0.0
  %494 = vmatprep.subr.mxu0 0.0
  %495 = vmatpush2.msra.mxu0 0.0
  %496 = vmatprep.subr.mxu0 0.0
  %497 = vmatpush2.msra.mxu0 0.0
  %498 = vmatprep.subr.mxu0 0.0
  %499 = vmatpush2.msra.mxu0 0.0
  %500 = vmatprep.subr.mxu0 0.0
  %501 = vmatpush2.msra.mxu0 0.0
  %502 = vmatprep.subr.mxu0 0.0
  %503 = vmatpush2.msra.mxu0 0.0
  %504 = vmatprep.subr.mxu0 0.0
  %505 = vmatpush2.msra.mxu0 0.0
  %506 = vmatprep.subr.mxu0 0.0
  %507 = vmatpush2.msra.mxu0 0.0
  %508 = vmatprep.subr.mxu0 0.0
  %509 = vmatpush2.msra.mxu0 0.0
  %510 = vmatprep.subr.mxu0 0.0
  %511 = vmatpush2.msra.mxu0 0.0
  %512 = vmatprep.mubr.f32.mxu0 0.0
  %513 = vmatmul.mubr.f32.gmra.mxu0 %v443
  %v514 = vpop.f32.mrf.mxu0
  %v515 = vadd.f32 0.0, %v514
  %v516 = vpop.f32.mrf.mxu0
  %517 = vmatprep.mubr.f32.mxu0 0.0
  %518 = vmatmul.mubr.f32.gmra.mxu0 %v446
  %v519 = vpop.f32.mrf.mxu0
  %v520 = vadd.f32 0.0, %v519
  %v521 = vpop.f32.mrf.mxu0
  %522 = vdwg.mxu0
  %s523 = scalar_lea.vmem %s4, 288
  %v524 = vld [vmem:[%s523] sm:$0xff]
  %v525 = vld [vmem:[%s523 + $0x8] sm:$0xff]
  %v526 = vld [vmem:[%s523 + $0x10] sm:$0xff]
  %v527 = vld [vmem:[%s523 + $0x18] sm:$0xff]
  %v528 = vld [vmem:[%s523 + $0x20] sm:$0xff]
  %v529 = vld [vmem:[%s523 + $0x28] sm:$0xff]
  %v530 = vld [vmem:[%s523 + $0x30] sm:$0xff]
  %v531 = vld [vmem:[%s523 + $0x38] sm:$0xff]
  %v532 = vld [vmem:[%s523 + $0x40] sm:$0xff]
  %s533 = scalar_lea.vmem %s4, 360
  %v534 = vld [vmem:[%s533] sm:$0xff]
  %v535 = vld [vmem:[%s533 + $0x8] sm:$0xff]
  %v536 = vld [vmem:[%s533 + $0x10] sm:$0xff]
  %v537 = vld [vmem:[%s533 + $0x18] sm:$0xff]
  %v538 = vld [vmem:[%s533 + $0x20] sm:$0xff]
  %v539 = vld [vmem:[%s533 + $0x28] sm:$0xff]
  %v540 = vld [vmem:[%s533 + $0x30] sm:$0xff]
  %v541 = vld [vmem:[%s533 + $0x38] sm:$0xff]
  %v542 = vld [vmem:[%s533 + $0x40] sm:$0xff]
  %v544 = vsel %vm340, %v315, 0
  %v547 = vsel %vm340, %v316, 0
  %549 = vmatprep.subr.mxu0 0.0
  %550 = vmatpush1.msra.mxu0 0.0
  %551 = vmatprep.subr.mxu0 0.0
  %552 = vmatpush1.msra.mxu0 0.0
  %553 = vmatprep.subr.mxu0 0.0
  %554 = vmatpush1.msra.mxu0 0.0
  %555 = vmatprep.subr.mxu0 0.0
  %556 = vmatpush1.msra.mxu0 0.0
  %557 = vmatprep.subr.mxu0 0.0
  %558 = vmatpush1.msra.mxu0 0.0
  %559 = vmatprep.subr.mxu0 0.0
  %560 = vmatpush1.msra.mxu0 0.0
  %561 = vmatprep.subr.mxu0 0.0
  %562 = vmatpush1.msra.mxu0 0.0
  %563 = vmatprep.subr.mxu0 0.0
  %564 = vmatpush1.msra.mxu0 %v542
  %565 = vmatprep.subr.mxu0 0.0
  %566 = vmatpush1.msra.mxu0 %v541
  %567 = vmatprep.subr.mxu0 0.0
  %568 = vmatpush1.msra.mxu0 %v540
  %569 = vmatprep.subr.mxu0 0.0
  %570 = vmatpush1.msra.mxu0 %v539
  %571 = vmatprep.subr.mxu0 0.0
  %572 = vmatpush1.msra.mxu0 %v538
  %573 = vmatprep.subr.mxu0 0.0
  %574 = vmatpush1.msra.mxu0 %v537
  %575 = vmatprep.subr.mxu0 0.0
  %576 = vmatpush1.msra.mxu0 %v536
  %577 = vmatprep.subr.mxu0 0.0
  %578 = vmatpush1.msra.mxu0 %v535
  %579 = vmatprep.subr.mxu0 0.0
  %580 = vmatpush1.msra.mxu0 %v534
  %581 = vmatprep.subr.mxu0 0.0
  %582 = vmatpush2.msra.mxu0 0.0
  %583 = vmatprep.subr.mxu0 0.0
  %584 = vmatpush2.msra.mxu0 0.0
  %585 = vmatprep.subr.mxu0 0.0
  %586 = vmatpush2.msra.mxu0 0.0
  %587 = vmatprep.subr.mxu0 0.0
  %588 = vmatpush2.msra.mxu0 0.0
  %589 = vmatprep.subr.mxu0 0.0
  %590 = vmatpush2.msra.mxu0 0.0
  %591 = vmatprep.subr.mxu0 0.0
  %592 = vmatpush2.msra.mxu0 0.0
  %593 = vmatprep.subr.mxu0 0.0
  %594 = vmatpush2.msra.mxu0 0.0
  %595 = vmatprep.subr.mxu0 0.0
  %596 = vmatpush2.msra.mxu0 0.0
  %597 = vmatprep.subr.mxu0 0.0
  %598 = vmatpush2.msra.mxu0 0.0
  %599 = vmatprep.subr.mxu0 0.0
  %600 = vmatpush2.msra.mxu0 0.0
  %601 = vmatprep.subr.mxu0 0.0
  %602 = vmatpush2.msra.mxu0 0.0
  %603 = vmatprep.subr.mxu0 0.0
  %604 = vmatpush2.msra.mxu0 0.0
  %605 = vmatprep.subr.mxu0 0.0
  %606 = vmatpush2.msra.mxu0 0.0
  %607 = vmatprep.subr.mxu0 0.0
  %608 = vmatpush2.msra.mxu0 0.0
  %609 = vmatprep.subr.mxu0 0.0
  %610 = vmatpush2.msra.mxu0 0.0
  %611 = vmatprep.subr.mxu0 0.0
  %612 = vmatpush2.msra.mxu0 0.0
  %613 = vmatprep.mubr.f32.mxu0 0.0
  %614 = vmatmul.mubr.f32.gmra.mxu0 %v544
  %v615 = vpop.f32.mrf.mxu0
  %v616 = vadd.f32 0.0, %v615
  %v617 = vpop.f32.mrf.mxu0
  %618 = vmatprep.mubr.f32.mxu0 0.0
  %619 = vmatmul.mubr.f32.gmra.mxu0 %v547
  %v620 = vpop.f32.mrf.mxu0
  %v621 = vadd.f32 0.0, %v620
  %v622 = vpop.f32.mrf.mxu0
  %623 = vdwg.mxu0
  %s624 = scalar_lea.vmem %s4, 432
  %v625 = vld [vmem:[%s624] sm:$0xff]
  %v626 = vld [vmem:[%s624 + $0x8] sm:$0xff]
  %v627 = vld [vmem:[%s624 + $0x10] sm:$0xff]
  %v628 = vld [vmem:[%s624 + $0x18] sm:$0xff]
  %v629 = vld [vmem:[%s624 + $0x20] sm:$0xff]
  %v630 = vld [vmem:[%s624 + $0x28] sm:$0xff]
  %v631 = vld [vmem:[%s624 + $0x30] sm:$0xff]
  %v632 = vld [vmem:[%s624 + $0x38] sm:$0xff]
  %v633 = vld [vmem:[%s624 + $0x40] sm:$0xff]
  %s634 = scalar_lea.vmem %s4, 504
  %v635 = vld [vmem:[%s634] sm:$0xff]
  %v636 = vld [vmem:[%s634 + $0x8] sm:$0xff]
  %v637 = vld [vmem:[%s634 + $0x10] sm:$0xff]
  %v638 = vld [vmem:[%s634 + $0x18] sm:$0xff]
  %v639 = vld [vmem:[%s634 + $0x20] sm:$0xff]
  %v640 = vld [vmem:[%s634 + $0x28] sm:$0xff]
  %v641 = vld [vmem:[%s634 + $0x30] sm:$0xff]
  %v642 = vld [vmem:[%s634 + $0x38] sm:$0xff]
  %v643 = vld [vmem:[%s634 + $0x40] sm:$0xff]
  %v645 = vsel %vm340, %v319, 0
  %v648 = vsel %vm340, %v320, 0
  %650 = vmatprep.subr.mxu0 0.0
  %651 = vmatpush1.msra.mxu0 0.0
  %652 = vmatprep.subr.mxu0 0.0
  %653 = vmatpush1.msra.mxu0 0.0
  %654 = vmatprep.subr.mxu0 0.0
  %655 = vmatpush1.msra.mxu0 0.0
  %656 = vmatprep.subr.mxu0 0.0
  %657 = vmatpush1.msra.mxu0 0.0
  %658 = vmatprep.subr.mxu0 0.0
  %659 = vmatpush1.msra.mxu0 0.0
  %660 = vmatprep.subr.mxu0 0.0
  %661 = vmatpush1.msra.mxu0 0.0
  %662 = vmatprep.subr.mxu0 0.0
  %663 = vmatpush1.msra.mxu0 0.0
  %664 = vmatprep.subr.mxu0 0.0
  %665 = vmatpush1.msra.mxu0 %v643
  %666 = vmatprep.subr.mxu0 0.0
  %667 = vmatpush1.msra.mxu0 %v642
  %668 = vmatprep.subr.mxu0 0.0
  %669 = vmatpush1.msra.mxu0 %v641
  %670 = vmatprep.subr.mxu0 0.0
  %671 = vmatpush1.msra.mxu0 %v640
  %672 = vmatprep.subr.mxu0 0.0
  %673 = vmatpush1.msra.mxu0 %v639
  %674 = vmatprep.subr.mxu0 0.0
  %675 = vmatpush1.msra.mxu0 %v638
  %676 = vmatprep.subr.mxu0 0.0
  %677 = vmatpush1.msra.mxu0 %v637
  %678 = vmatprep.subr.mxu0 0.0
  %679 = vmatpush1.msra.mxu0 %v636
  %680 = vmatprep.subr.mxu0 0.0
  %681 = vmatpush1.msra.mxu0 %v635
  %682 = vmatprep.subr.mxu0 0.0
  %683 = vmatpush2.msra.mxu0 0.0
  %684 = vmatprep.subr.mxu0 0.0
  %685 = vmatpush2.msra.mxu0 0.0
  %686 = vmatprep.subr.mxu0 0.0
  %687 = vmatpush2.msra.mxu0 0.0
  %688 = vmatprep.subr.mxu0 0.0
  %689 = vmatpush2.msra.mxu0 0.0
  %690 = vmatprep.subr.mxu0 0.0
  %691 = vmatpush2.msra.mxu0 0.0
  %692 = vmatprep.subr.mxu0 0.0
  %693 = vmatpush2.msra.mxu0 0.0
  %694 = vmatprep.subr.mxu0 0.0
  %695 = vmatpush2.msra.mxu0 0.0
  %696 = vmatprep.subr.mxu0 0.0
  %697 = vmatpush2.msra.mxu0 0.0
  %698 = vmatprep.subr.mxu0 0.0
  %699 = vmatpush2.msra.mxu0 0.0
  %700 = vmatprep.subr.mxu0 0.0
  %701 = vmatpush2.msra.mxu0 0.0
  %702 = vmatprep.subr.mxu0 0.0
  %703 = vmatpush2.msra.mxu0 0.0
  %704 = vmatprep.subr.mxu0 0.0
  %705 = vmatpush2.msra.mxu0 0.0
  %706 = vmatprep.subr.mxu0 0.0
  %707 = vmatpush2.msra.mxu0 0.0
  %708 = vmatprep.subr.mxu0 0.0
  %709 = vmatpush2.msra.mxu0 0.0
  %710 = vmatprep.subr.mxu0 0.0
  %711 = vmatpush2.msra.mxu0 0.0
  %712 = vmatprep.subr.mxu0 0.0
  %713 = vmatpush2.msra.mxu0 0.0
  %714 = vmatprep.mubr.f32.mxu0 0.0
  %715 = vmatmul.mubr.f32.gmra.mxu0 %v645
  %v716 = vpop.f32.mrf.mxu0
  %v717 = vadd.f32 0.0, %v716
  %v718 = vpop.f32.mrf.mxu0
  %719 = vmatprep.mubr.f32.mxu0 0.0
  %720 = vmatmul.mubr.f32.gmra.mxu0 %v648
  %v721 = vpop.f32.mrf.mxu0
  %v722 = vadd.f32 0.0, %v721
  %v723 = vpop.f32.mrf.mxu0
  %724 = vdwg.mxu0
  %v726 = vsel %vm340, %v305, 0
  %v729 = vsel %vm340, %v306, 0
  %731 = vmatprep.subr.mxu0 0.0
  %732 = vmatpush1.msra.mxu0 0.0
  %733 = vmatprep.subr.mxu0 0.0
  %734 = vmatpush1.msra.mxu0 0.0
  %735 = vmatprep.subr.mxu0 0.0
  %736 = vmatpush1.msra.mxu0 0.0
  %737 = vmatprep.subr.mxu0 0.0
  %738 = vmatpush1.msra.mxu0 0.0
  %739 = vmatprep.subr.mxu0 0.0
  %740 = vmatpush1.msra.mxu0 0.0
  %741 = vmatprep.subr.mxu0 0.0
  %742 = vmatpush1.msra.mxu0 0.0
  %743 = vmatprep.subr.mxu0 0.0
  %744 = vmatpush1.msra.mxu0 0.0
  %745 = vmatprep.subr.mxu0 0.0
  %746 = vmatpush1.msra.mxu0 %v329
  %747 = vmatprep.subr.mxu0 0.0
  %748 = vmatpush1.msra.mxu0 %v328
  %749 = vmatprep.subr.mxu0 0.0
  %750 = vmatpush1.msra.mxu0 %v327
  %751 = vmatprep.subr.mxu0 0.0
  %752 = vmatpush1.msra.mxu0 %v326
  %753 = vmatprep.subr.mxu0 0.0
  %754 = vmatpush1.msra.mxu0 %v325
  %755 = vmatprep.subr.mxu0 0.0
  %756 = vmatpush1.msra.mxu0 %v324
  %757 = vmatprep.subr.mxu0 0.0
  %758 = vmatpush1.msra.mxu0 %v323
  %759 = vmatprep.subr.mxu0 0.0
  %760 = vmatpush1.msra.mxu0 %v322
  %761 = vmatprep.subr.mxu0 0.0
  %762 = vmatpush1.msra.mxu0 %v321
  %763 = vmatprep.subr.mxu0 0.0
  %764 = vmatpush2.msra.mxu0 0.0
  %765 = vmatprep.subr.mxu0 0.0
  %766 = vmatpush2.msra.mxu0 0.0
  %767 = vmatprep.subr.mxu0 0.0
  %768 = vmatpush2.msra.mxu0 0.0
  %769 = vmatprep.subr.mxu0 0.0
  %770 = vmatpush2.msra.mxu0 0.0
  %771 = vmatprep.subr.mxu0 0.0
  %772 = vmatpush2.msra.mxu0 0.0
  %773 = vmatprep.subr.mxu0 0.0
  %774 = vmatpush2.msra.mxu0 0.0
  %775 = vmatprep.subr.mxu0 0.0
  %776 = vmatpush2.msra.mxu0 0.0
  %777 = vmatprep.subr.mxu0 0.0
  %778 = vmatpush2.msra.mxu0 0.0
  %779 = vmatprep.subr.mxu0 0.0
  %780 = vmatpush2.msra.mxu0 0.0
  %781 = vmatprep.subr.mxu0 0.0
  %782 = vmatpush2.msra.mxu0 0.0
  %783 = vmatprep.subr.mxu0 0.0
  %784 = vmatpush2.msra.mxu0 0.0
  %785 = vmatprep.subr.mxu0 0.0
  %786 = vmatpush2.msra.mxu0 0.0
  %787 = vmatprep.subr.mxu0 0.0
  %788 = vmatpush2.msra.mxu0 0.0
  %789 = vmatprep.subr.mxu0 0.0
  %790 = vmatpush2.msra.mxu0 0.0
  %791 = vmatprep.subr.mxu0 0.0
  %792 = vmatpush2.msra.mxu0 0.0
  %793 = vmatprep.subr.mxu0 0.0
  %794 = vmatpush2.msra.mxu0 0.0
  %795 = vmatprep.mubr.f32.mxu0 0.0
  %796 = vmatmul.mubr.f32.gmra.mxu0 %v726
  %v797 = vpop.f32.mrf.mxu0
  %v798 = vadd.f32 %v414, %v797
  %v799 = vpop.f32.mrf.mxu0
  %800 = vmatprep.mubr.f32.mxu0 0.0
  %801 = vmatmul.mubr.f32.gmra.mxu0 %v729
  %v802 = vpop.f32.mrf.mxu0
  %v803 = vadd.f32 %v419, %v802
  %v804 = vpop.f32.mrf.mxu0
  %805 = vdwg.mxu0
  %v807 = vsel %vm340, %v309, 0
  %v810 = vsel %vm340, %v310, 0
  %812 = vmatprep.subr.mxu0 0.0
  %813 = vmatpush1.msra.mxu0 0.0
  %814 = vmatprep.subr.mxu0 0.0
  %815 = vmatpush1.msra.mxu0 0.0
  %816 = vmatprep.subr.mxu0 0.0
  %817 = vmatpush1.msra.mxu0 0.0
  %818 = vmatprep.subr.mxu0 0.0
  %819 = vmatpush1.msra.mxu0 0.0
  %820 = vmatprep.subr.mxu0 0.0
  %821 = vmatpush1.msra.mxu0 0.0
  %822 = vmatprep.subr.mxu0 0.0
  %823 = vmatpush1.msra.mxu0 0.0
  %824 = vmatprep.subr.mxu0 0.0
  %825 = vmatpush1.msra.mxu0 0.0
  %826 = vmatprep.subr.mxu0 0.0
  %827 = vmatpush1.msra.mxu0 %v431
  %828 = vmatprep.subr.mxu0 0.0
  %829 = vmatpush1.msra.mxu0 %v430
  %830 = vmatprep.subr.mxu0 0.0
  %831 = vmatpush1.msra.mxu0 %v429
  %832 = vmatprep.subr.mxu0 0.0
  %833 = vmatpush1.msra.mxu0 %v428
  %834 = vmatprep.subr.mxu0 0.0
  %835 = vmatpush1.msra.mxu0 %v427
  %836 = vmatprep.subr.mxu0 0.0
  %837 = vmatpush1.msra.mxu0 %v426
  %838 = vmatprep.subr.mxu0 0.0
  %839 = vmatpush1.msra.mxu0 %v425
  %840 = vmatprep.subr.mxu0 0.0
  %841 = vmatpush1.msra.mxu0 %v424
  %842 = vmatprep.subr.mxu0 0.0
  %843 = vmatpush1.msra.mxu0 %v423
  %844 = vmatprep.subr.mxu0 0.0
  %845 = vmatpush2.msra.mxu0 0.0
  %846 = vmatprep.subr.mxu0 0.0
  %847 = vmatpush2.msra.mxu0 0.0
  %848 = vmatprep.subr.mxu0 0.0
  %849 = vmatpush2.msra.mxu0 0.0
  %850 = vmatprep.subr.mxu0 0.0
  %851 = vmatpush2.msra.mxu0 0.0
  %852 = vmatprep.subr.mxu0 0.0
  %853 = vmatpush2.msra.mxu0 0.0
  %854 = vmatprep.subr.mxu0 0.0
  %855 = vmatpush2.msra.mxu0 0.0
  %856 = vmatprep.subr.mxu0 0.0
  %857 = vmatpush2.msra.mxu0 0.0
  %858 = vmatprep.subr.mxu0 0.0
  %859 = vmatpush2.msra.mxu0 0.0
  %860 = vmatprep.subr.mxu0 0.0
  %861 = vmatpush2.msra.mxu0 0.0
  %862 = vmatprep.subr.mxu0 0.0
  %863 = vmatpush2.msra.mxu0 0.0
  %864 = vmatprep.subr.mxu0 0.0
  %865 = vmatpush2.msra.mxu0 0.0
  %866 = vmatprep.subr.mxu0 0.0
  %867 = vmatpush2.msra.mxu0 0.0
  %868 = vmatprep.subr.mxu0 0.0
  %869 = vmatpush2.msra.mxu0 0.0
  %870 = vmatprep.subr.mxu0 0.0
  %871 = vmatpush2.msra.mxu0 0.0
  %872 = vmatprep.subr.mxu0 0.0
  %873 = vmatpush2.msra.mxu0 0.0
  %874 = vmatprep.subr.mxu0 0.0
  %875 = vmatpush2.msra.mxu0 0.0
  %876 = vmatprep.mubr.f32.mxu0 0.0
  %877 = vmatmul.mubr.f32.gmra.mxu0 %v807
  %v878 = vpop.f32.mrf.mxu0
  %v879 = vadd.f32 %v515, %v878
  %v880 = vpop.f32.mrf.mxu0
  %881 = vmatprep.mubr.f32.mxu0 0.0
  %882 = vmatmul.mubr.f32.gmra.mxu0 %v810
  %v883 = vpop.f32.mrf.mxu0
  %v884 = vadd.f32 %v520, %v883
  %v885 = vpop.f32.mrf.mxu0
  %886 = vdwg.mxu0
  %v888 = vsel %vm340, %v313, 0
  %v891 = vsel %vm340, %v314, 0
  %893 = vmatprep.subr.mxu0 0.0
  %894 = vmatpush1.msra.mxu0 0.0
  %895 = vmatprep.subr.mxu0 0.0
  %896 = vmatpush1.msra.mxu0 0.0
  %897 = vmatprep.subr.mxu0 0.0
  %898 = vmatpush1.msra.mxu0 0.0
  %899 = vmatprep.subr.mxu0 0.0
  %900 = vmatpush1.msra.mxu0 0.0
  %901 = vmatprep.subr.mxu0 0.0
  %902 = vmatpush1.msra.mxu0 0.0
  %903 = vmatprep.subr.mxu0 0.0
  %904 = vmatpush1.msra.mxu0 0.0
  %905 = vmatprep.subr.mxu0 0.0
  %906 = vmatpush1.msra.mxu0 0.0
  %907 = vmatprep.subr.mxu0 0.0
  %908 = vmatpush1.msra.mxu0 %v532
  %909 = vmatprep.subr.mxu0 0.0
  %910 = vmatpush1.msra.mxu0 %v531
  %911 = vmatprep.subr.mxu0 0.0
  %912 = vmatpush1.msra.mxu0 %v530
  %913 = vmatprep.subr.mxu0 0.0
  %914 = vmatpush1.msra.mxu0 %v529
  %915 = vmatprep.subr.mxu0 0.0
  %916 = vmatpush1.msra.mxu0 %v528
  %917 = vmatprep.subr.mxu0 0.0
  %918 = vmatpush1.msra.mxu0 %v527
  %919 = vmatprep.subr.mxu0 0.0
  %920 = vmatpush1.msra.mxu0 %v526
  %921 = vmatprep.subr.mxu0 0.0
  %922 = vmatpush1.msra.mxu0 %v525
  %923 = vmatprep.subr.mxu0 0.0
  %924 = vmatpush1.msra.mxu0 %v524
  %925 = vmatprep.subr.mxu0 0.0
  %926 = vmatpush2.msra.mxu0 0.0
  %927 = vmatprep.subr.mxu0 0.0
  %928 = vmatpush2.msra.mxu0 0.0
  %929 = vmatprep.subr.mxu0 0.0
  %930 = vmatpush2.msra.mxu0 0.0
  %931 = vmatprep.subr.mxu0 0.0
  %932 = vmatpush2.msra.mxu0 0.0
  %933 = vmatprep.subr.mxu0 0.0
  %934 = vmatpush2.msra.mxu0 0.0
  %935 = vmatprep.subr.mxu0 0.0
  %936 = vmatpush2.msra.mxu0 0.0
  %937 = vmatprep.subr.mxu0 0.0
  %938 = vmatpush2.msra.mxu0 0.0
  %939 = vmatprep.subr.mxu0 0.0
  %940 = vmatpush2.msra.mxu0 0.0
  %941 = vmatprep.subr.mxu0 0.0
  %942 = vmatpush2.msra.mxu0 0.0
  %943 = vmatprep.subr.mxu0 0.0
  %944 = vmatpush2.msra.mxu0 0.0
  %945 = vmatprep.subr.mxu0 0.0
  %946 = vmatpush2.msra.mxu0 0.0
  %947 = vmatprep.subr.mxu0 0.0
  %948 = vmatpush2.msra.mxu0 0.0
  %949 = vmatprep.subr.mxu0 0.0
  %950 = vmatpush2.msra.mxu0 0.0
  %951 = vmatprep.subr.mxu0 0.0
  %952 = vmatpush2.msra.mxu0 0.0
  %953 = vmatprep.subr.mxu0 0.0
  %954 = vmatpush2.msra.mxu0 0.0
  %955 = vmatprep.subr.mxu0 0.0
  %956 = vmatpush2.msra.mxu0 0.0
  %957 = vmatprep.mubr.f32.mxu0 0.0
  %958 = vmatmul.mubr.f32.gmra.mxu0 %v888
  %v959 = vpop.f32.mrf.mxu0
  %v960 = vadd.f32 %v616, %v959
  %v961 = vpop.f32.mrf.mxu0
  %962 = vmatprep.mubr.f32.mxu0 0.0
  %963 = vmatmul.mubr.f32.gmra.mxu0 %v891
  %v964 = vpop.f32.mrf.mxu0
  %v965 = vadd.f32 %v621, %v964
  %v966 = vpop.f32.mrf.mxu0
  %967 = vdwg.mxu0
  %v969 = vsel %vm340, %v317, 0
  %v972 = vsel %vm340, %v318, 0
  %974 = vmatprep.subr.mxu0 0.0
  %975 = vmatpush1.msra.mxu0 0.0
  %976 = vmatprep.subr.mxu0 0.0
  %977 = vmatpush1.msra.mxu0 0.0
  %978 = vmatprep.subr.mxu0 0.0
  %979 = vmatpush1.msra.mxu0 0.0
  %980 = vmatprep.subr.mxu0 0.0
  %981 = vmatpush1.msra.mxu0 0.0
  %982 = vmatprep.subr.mxu0 0.0
  %983 = vmatpush1.msra.mxu0 0.0
  %984 = vmatprep.subr.mxu0 0.0
  %985 = vmatpush1.msra.mxu0 0.0
  %986 = vmatprep.subr.mxu0 0.0
  %987 = vmatpush1.msra.mxu0 0.0
  %988 = vmatprep.subr.mxu0 0.0
  %989 = vmatpush1.msra.mxu0 %v633
  %990 = vmatprep.subr.mxu0 0.0
  %991 = vmatpush1.msra.mxu0 %v632
  %992 = vmatprep.subr.mxu0 0.0
  %993 = vmatpush1.msra.mxu0 %v631
  %994 = vmatprep.subr.mxu0 0.0
  %995 = vmatpush1.msra.mxu0 %v630
  %996 = vmatprep.subr.mxu0 0.0
  %997 = vmatpush1.msra.mxu0 %v629
  %998 = vmatprep.subr.mxu0 0.0
  %999 = vmatpush1.msra.mxu0 %v628
  %1000 = vmatprep.subr.mxu0 0.0
  %1001 = vmatpush1.msra.mxu0 %v627
  %1002 = vmatprep.subr.mxu0 0.0
  %1003 = vmatpush1.msra.mxu0 %v626
  %1004 = vmatprep.subr.mxu0 0.0
  %1005 = vmatpush1.msra.mxu0 %v625
  %1006 = vmatprep.subr.mxu0 0.0
  %1007 = vmatpush2.msra.mxu0 0.0
  %1008 = vmatprep.subr.mxu0 0.0
  %1009 = vmatpush2.msra.mxu0 0.0
  %1010 = vmatprep.subr.mxu0 0.0
  %1011 = vmatpush2.msra.mxu0 0.0
  %1012 = vmatprep.subr.mxu0 0.0
  %1013 = vmatpush2.msra.mxu0 0.0
  %1014 = vmatprep.subr.mxu0 0.0
  %1015 = vmatpush2.msra.mxu0 0.0
  %1016 = vmatprep.subr.mxu0 0.0
  %1017 = vmatpush2.msra.mxu0 0.0
  %1018 = vmatprep.subr.mxu0 0.0
  %1019 = vmatpush2.msra.mxu0 0.0
  %1020 = vmatprep.subr.mxu0 0.0
  %1021 = vmatpush2.msra.mxu0 0.0
  %1022 = vmatprep.subr.mxu0 0.0
  %1023 = vmatpush2.msra.mxu0 0.0
  %1024 = vmatprep.subr.mxu0 0.0
  %1025 = vmatpush2.msra.mxu0 0.0
  %1026 = vmatprep.subr.mxu0 0.0
  %1027 = vmatpush2.msra.mxu0 0.0
  %1028 = vmatprep.subr.mxu0 0.0
  %1029 = vmatpush2.msra.mxu0 0.0
  %1030 = vmatprep.subr.mxu0 0.0
  %1031 = vmatpush2.msra.mxu0 0.0
  %1032 = vmatprep.subr.mxu0 0.0
  %1033 = vmatpush2.msra.mxu0 0.0
  %1034 = vmatprep.subr.mxu0 0.0
  %1035 = vmatpush2.msra.mxu0 0.0
  %1036 = vmatprep.subr.mxu0 0.0
  %1037 = vmatpush2.msra.mxu0 0.0
  %1038 = vmatprep.mubr.f32.mxu0 0.0
  %1039 = vmatmul.mubr.f32.gmra.mxu0 %v969
  %v1040 = vpop.f32.mrf.mxu0
  %v1041 = vadd.f32 %v717, %v1040
  %v1042 = vpop.f32.mrf.mxu0
  %1043 = vmatprep.mubr.f32.mxu0 0.0
  %1044 = vmatmul.mubr.f32.gmra.mxu0 %v972
  %v1045 = vpop.f32.mrf.mxu0
  %v1046 = vadd.f32 %v722, %v1045
  %v1047 = vpop.f32.mrf.mxu0
  %1048 = vdwg.mxu0
  %v1049 = vadd.f32 %v798, %v879
  %v1050 = vadd.f32 %v803, %v884
  %v1051 = vadd.f32 %v960, %v1041
  %v1052 = vadd.f32 %v965, %v1046
  %v1053 = vadd.f32 %v1049, %v1051
  %v1054 = vadd.f32 %v1050, %v1052
  %v1055 = vld [vmem:[%s5] sm:$0x1]
  %v1057 = vlaneseq
  %v1058 = vshrl.u32 %v1057, 7
  %v1059 = vsub.s32 0, %v1058
  %v1060 = vrot.slane %v1055, %v1059
  %v1062 = vadd.f32 %v1053, %v1060
  %v1063 = vadd.f32 %v1054, %v1060
  %v1064 = vmax.f32 %v1062, 0.0
  %v1065 = vmax.f32 %v1063, 0.0
  %v1066 = vld [vmem:[%s6] sm:$0xff]
  %v1067 = vld [vmem:[%s6 + $0x8] sm:$0xff]
  %v1068 = vld [vmem:[%s6 + $0x10] sm:$0xff]
  %v1069 = vld [vmem:[%s6 + $0x18] sm:$0xff]
  %v1070 = vld [vmem:[%s6 + $0x20] sm:$0xff]
  %v1071 = vld [vmem:[%s6 + $0x28] sm:$0xff]
  %v1072 = vld [vmem:[%s6 + $0x30] sm:$0xff]
  %v1073 = vld [vmem:[%s6 + $0x38] sm:$0xff]
  %v1074 = vld [vmem:[%s7] sm:$0x1]
  %v1076 = vlaneseq
  %v1077 = vshrl.u32 %v1076, 7
  %v1078 = vsub.s32 0, %v1077
  %v1079 = vrot.slane %v1074, %v1078
  %vm1081 = vcmask 523264
  %v1083 = vsel %vm1081, %v1064, 0
  %v1086 = vsel %vm1081, %v1065, 0
  %1088 = vmatprep.subr.mxu0 0.0
  %1089 = vmatpush1.msra.mxu0 0.0
  %1090 = vmatprep.subr.mxu0 0.0
  %1091 = vmatpush1.msra.mxu0 0.0
  %1092 = vmatprep.subr.mxu0 0.0
  %1093 = vmatpush1.msra.mxu0 0.0
  %1094 = vmatprep.subr.mxu0 0.0
  %1095 = vmatpush1.msra.mxu0 0.0
  %1096 = vmatprep.subr.mxu0 0.0
  %1097 = vmatpush1.msra.mxu0 0.0
  %1098 = vmatprep.subr.mxu0 0.0
  %1099 = vmatpush1.msra.mxu0 0.0
  %1100 = vmatprep.subr.mxu0 0.0
  %1101 = vmatpush1.msra.mxu0 0.0
  %1102 = vmatprep.subr.mxu0 0.0
  %1103 = vmatpush1.msra.mxu0 0.0
  %1104 = vmatprep.subr.mxu0 0.0
  %1105 = vmatpush1.msra.mxu0 %v1073
  %1106 = vmatprep.subr.mxu0 0.0
  %1107 = vmatpush1.msra.mxu0 %v1072
  %1108 = vmatprep.subr.mxu0 0.0
  %1109 = vmatpush1.msra.mxu0 %v1071
  %1110 = vmatprep.subr.mxu0 0.0
  %1111 = vmatpush1.msra.mxu0 %v1070
  %1112 = vmatprep.subr.mxu0 0.0
  %1113 = vmatpush1.msra.mxu0 %v1069
  %1114 = vmatprep.subr.mxu0 0.0
  %1115 = vmatpush1.msra.mxu0 %v1068
  %1116 = vmatprep.subr.mxu0 0.0
  %1117 = vmatpush1.msra.mxu0 %v1067
  %1118 = vmatprep.subr.mxu0 0.0
  %1119 = vmatpush1.msra.mxu0 %v1066
  %1120 = vmatprep.subr.mxu0 0.0
  %1121 = vmatpush2.msra.mxu0 0.0
  %1122 = vmatprep.subr.mxu0 0.0
  %1123 = vmatpush2.msra.mxu0 0.0
  %1124 = vmatprep.subr.mxu0 0.0
  %1125 = vmatpush2.msra.mxu0 0.0
  %1126 = vmatprep.subr.mxu0 0.0
  %1127 = vmatpush2.msra.mxu0 0.0
  %1128 = vmatprep.subr.mxu0 0.0
  %1129 = vmatpush2.msra.mxu0 0.0
  %1130 = vmatprep.subr.mxu0 0.0
  %1131 = vmatpush2.msra.mxu0 0.0
  %1132 = vmatprep.subr.mxu0 0.0
  %1133 = vmatpush2.msra.mxu0 0.0
  %1134 = vmatprep.subr.mxu0 0.0
  %1135 = vmatpush2.msra.mxu0 0.0
  %1136 = vmatprep.subr.mxu0 0.0
  %1137 = vmatpush2.msra.mxu0 0.0
  %1138 = vmatprep.subr.mxu0 0.0
  %1139 = vmatpush2.msra.mxu0 0.0
  %1140 = vmatprep.subr.mxu0 0.0
  %1141 = vmatpush2.msra.mxu0 0.0
  %1142 = vmatprep.subr.mxu0 0.0
  %1143 = vmatpush2.msra.mxu0 0.0
  %1144 = vmatprep.subr.mxu0 0.0
  %1145 = vmatpush2.msra.mxu0 0.0
  %1146 = vmatprep.subr.mxu0 0.0
  %1147 = vmatpush2.msra.mxu0 0.0
  %1148 = vmatprep.subr.mxu0 0.0
  %1149 = vmatpush2.msra.mxu0 0.0
  %1150 = vmatprep.subr.mxu0 0.0
  %1151 = vmatpush2.msra.mxu0 0.0
  %1152 = vmatprep.mubr.f32.mxu0 0.0
  %1153 = vmatmul.mubr.f32.gmra.mxu0 %v1083
  %v1154 = vpop.f32.mrf.mxu0
  %v1155 = vadd.f32 %v1079, %v1154
  %v1156 = vpop.f32.mrf.mxu0
  %1157 = vmatprep.mubr.f32.mxu0 0.0
  %1158 = vmatmul.mubr.f32.gmra.mxu0 %v1086
  %v1159 = vpop.f32.mrf.mxu0
  %v1160 = vadd.f32 %v1079, %v1159
  %v1161 = vpop.f32.mrf.mxu0
  %1162 = vdwg.mxu0
  %v1163 = vld [vmem:[%s8] sm:$0xff]
  %v1164 = vld [vmem:[%s8 + $0x8] sm:$0xff]
  %v1165 = vld [vmem:[%s8 + $0x10] sm:$0xff]
  %v1166 = vld [vmem:[%s8 + $0x18] sm:$0xff]
  %v1167 = vld [vmem:[%s8 + $0x20] sm:$0xf]
  %v1168 = vld [vmem:[%s9] sm:$0x1]
  %v1170 = vlaneseq
  %v1171 = vshrl.u32 %v1170, 7
  %v1172 = vsub.s32 0, %v1171
  %v1173 = vrot.slane %v1168, %v1172
  %v1176 = vsel %vm124, %v1167, 0
  %1178 = vmatprep.subr.mxu0 0.0
  %1179 = vmatpush1.msra.mxu0 0.0
  %1180 = vmatprep.subr.mxu0 0.0
  %1181 = vmatpush1.msra.mxu0 0.0
  %1182 = vmatprep.subr.mxu0 0.0
  %1183 = vmatpush1.msra.mxu0 0.0
  %1184 = vmatprep.subr.mxu0 0.0
  %1185 = vmatpush1.msra.mxu0 0.0
  %1186 = vmatprep.subr.mxu0 0.0
  %1187 = vmatpush1.msra.mxu0 0.0
  %1188 = vmatprep.subr.mxu0 0.0
  %1189 = vmatpush1.msra.mxu0 0.0
  %1190 = vmatprep.subr.mxu0 0.0
  %1191 = vmatpush1.msra.mxu0 0.0
  %1192 = vmatprep.subr.mxu0 0.0
  %1193 = vmatpush1.msra.mxu0 0.0
  %1194 = vmatprep.subr.mxu0 0.0
  %1195 = vmatpush1.msra.mxu0 0.0
  %1196 = vmatprep.subr.mxu0 0.0
  %1197 = vmatpush1.msra.mxu0 0.0
  %1198 = vmatprep.subr.mxu0 0.0
  %1199 = vmatpush1.msra.mxu0 0.0
  %1200 = vmatprep.subr.mxu0 0.0
  %1201 = vmatpush1.msra.mxu0 %v1176
  %1202 = vmatprep.subr.mxu0 0.0
  %1203 = vmatpush1.msra.mxu0 %v1166
  %1204 = vmatprep.subr.mxu0 0.0
  %1205 = vmatpush1.msra.mxu0 %v1165
  %1206 = vmatprep.subr.mxu0 0.0
  %1207 = vmatpush1.msra.mxu0 %v1164
  %1208 = vmatprep.subr.mxu0 0.0
  %1209 = vmatpush1.msra.mxu0 %v1163
  %1210 = vmatprep.subr.mxu0 0.0
  %1211 = vmatpush2.msra.mxu0 0.0
  %1212 = vmatprep.subr.mxu0 0.0
  %1213 = vmatpush2.msra.mxu0 0.0
  %1214 = vmatprep.subr.mxu0 0.0
  %1215 = vmatpush2.msra.mxu0 0.0
  %1216 = vmatprep.subr.mxu0 0.0
  %1217 = vmatpush2.msra.mxu0 0.0
  %1218 = vmatprep.subr.mxu0 0.0
  %1219 = vmatpush2.msra.mxu0 0.0
  %1220 = vmatprep.subr.mxu0 0.0
  %1221 = vmatpush2.msra.mxu0 0.0
  %1222 = vmatprep.subr.mxu0 0.0
  %1223 = vmatpush2.msra.mxu0 0.0
  %1224 = vmatprep.subr.mxu0 0.0
  %1225 = vmatpush2.msra.mxu0 0.0
  %1226 = vmatprep.subr.mxu0 0.0
  %1227 = vmatpush2.msra.mxu0 0.0
  %1228 = vmatprep.subr.mxu0 0.0
  %1229 = vmatpush2.msra.mxu0 0.0
  %1230 = vmatprep.subr.mxu0 0.0
  %1231 = vmatpush2.msra.mxu0 0.0
  %1232 = vmatprep.subr.mxu0 0.0
  %1233 = vmatpush2.msra.mxu0 0.0
  %1234 = vmatprep.subr.mxu0 0.0
  %1235 = vmatpush2.msra.mxu0 0.0
  %1236 = vmatprep.subr.mxu0 0.0
  %1237 = vmatpush2.msra.mxu0 0.0
  %1238 = vmatprep.subr.mxu0 0.0
  %1239 = vmatpush2.msra.mxu0 0.0
  %1240 = vmatprep.subr.mxu0 0.0
  %1241 = vmatpush2.msra.mxu0 0.0
  %1242 = vmatprep.mubr.f32.mxu0 0.0
  %1243 = vmatmul.mubr.f32.gmra.mxu0 %v101
  %v1244 = vpop.f32.mrf.mxu0
  %v1245 = vadd.f32 %v1173, %v1244
  %v1246 = vpop.f32.mrf.mxu0
  %1247 = vmatprep.mubr.f32.mxu0 0.0
  %1248 = vmatmul.mubr.f32.gmra.mxu0 %v104
  %v1249 = vpop.f32.mrf.mxu0
  %v1250 = vadd.f32 %v1173, %v1249
  %v1251 = vpop.f32.mrf.mxu0
  %1252 = vdwg.mxu0
  %vm1253 = vcmask 261120
  %v1254 = vsel %vm1253, %v1155, 0.0
  %v1255 = vsel %vm1253, %v1160, 0.0
  %v1256 = vadd.f32 %v1254, %v1255
  %v1257 = vrot.slane %v1256, 4
  %v1258 = vadd.f32 %v1256, %v1257
  %v1259 = vrot.slane %v1258, 2
  %v1260 = vadd.f32 %v1258, %v1259
  %v1261 = vrot.slane %v1260, 1
  %v1262 = vadd.f32 %v1260, %v1261
  %v1263 = vmul.f32 %v1155, %v1155
  %v1264 = vmul.f32 %v1160, %v1160
  %v1265 = vsel %vm1253, %v1263, 0.0
  %v1266 = vsel %vm1253, %v1264, 0.0
  %v1267 = vadd.f32 %v1265, %v1266
  %v1268 = vrot.slane %v1267, 4
  %v1269 = vadd.f32 %v1267, %v1268
  %v1270 = vrot.slane %v1269, 2
  %v1271 = vadd.f32 %v1269, %v1270
  %v1272 = vrot.slane %v1271, 1
  %v1273 = vadd.f32 %v1271, %v1272
  %v1274 = vld [vmem:[%s12] sm:$0xff]
  %v1275 = vld [vmem:[%s12 + $0x8] sm:$0xff]
  %v1276 = vld [vmem:[%s12 + $0x10] sm:$0xff]
  %v1277 = vld [vmem:[%s12 + $0x18] sm:$0xff]
  %v1279 = vsel %vm1253, %v1262, 0
  %1281 = vmatprep.subr.mxu0 0.0
  %1282 = vmatpush1.msra.mxu0 0.0
  %1283 = vmatprep.subr.mxu0 0.0
  %1284 = vmatpush1.msra.mxu0 0.0
  %1285 = vmatprep.subr.mxu0 0.0
  %1286 = vmatpush1.msra.mxu0 0.0
  %1287 = vmatprep.subr.mxu0 0.0
  %1288 = vmatpush1.msra.mxu0 0.0
  %1289 = vmatprep.subr.mxu0 0.0
  %1290 = vmatpush1.msra.mxu0 0.0
  %1291 = vmatprep.subr.mxu0 0.0
  %1292 = vmatpush1.msra.mxu0 0.0
  %1293 = vmatprep.subr.mxu0 0.0
  %1294 = vmatpush1.msra.mxu0 0.0
  %1295 = vmatprep.subr.mxu0 0.0
  %1296 = vmatpush1.msra.mxu0 0.0
  %1297 = vmatprep.subr.mxu0 0.0
  %1298 = vmatpush1.msra.mxu0 0.0
  %1299 = vmatprep.subr.mxu0 0.0
  %1300 = vmatpush1.msra.mxu0 0.0
  %1301 = vmatprep.subr.mxu0 0.0
  %1302 = vmatpush1.msra.mxu0 0.0
  %1303 = vmatprep.subr.mxu0 0.0
  %1304 = vmatpush1.msra.mxu0 0.0
  %1305 = vmatprep.subr.mxu0 0.0
  %1306 = vmatpush1.msra.mxu0 %v1277
  %1307 = vmatprep.subr.mxu0 0.0
  %1308 = vmatpush1.msra.mxu0 %v1276
  %1309 = vmatprep.subr.mxu0 0.0
  %1310 = vmatpush1.msra.mxu0 %v1275
  %1311 = vmatprep.subr.mxu0 0.0
  %1312 = vmatpush1.msra.mxu0 %v1274
  %1313 = vmatprep.subr.mxu0 0.0
  %1314 = vmatpush2.msra.mxu0 0.0
  %1315 = vmatprep.subr.mxu0 0.0
  %1316 = vmatpush2.msra.mxu0 0.0
  %1317 = vmatprep.subr.mxu0 0.0
  %1318 = vmatpush2.msra.mxu0 0.0
  %1319 = vmatprep.subr.mxu0 0.0
  %1320 = vmatpush2.msra.mxu0 0.0
  %1321 = vmatprep.subr.mxu0 0.0
  %1322 = vmatpush2.msra.mxu0 0.0
  %1323 = vmatprep.subr.mxu0 0.0
  %1324 = vmatpush2.msra.mxu0 0.0
  %1325 = vmatprep.subr.mxu0 0.0
  %1326 = vmatpush2.msra.mxu0 0.0
  %1327 = vmatprep.subr.mxu0 0.0
  %1328 = vmatpush2.msra.mxu0 0.0
  %1329 = vmatprep.subr.mxu0 0.0
  %1330 = vmatpush2.msra.mxu0 0.0
  %1331 = vmatprep.subr.mxu0 0.0
  %1332 = vmatpush2.msra.mxu0 0.0
  %1333 = vmatprep.subr.mxu0 0.0
  %1334 = vmatpush2.msra.mxu0 0.0
  %1335 = vmatprep.subr.mxu0 0.0
  %1336 = vmatpush2.msra.mxu0 0.0
  %1337 = vmatprep.subr.mxu0 0.0
  %1338 = vmatpush2.msra.mxu0 0.0
  %1339 = vmatprep.subr.mxu0 0.0
  %1340 = vmatpush2.msra.mxu0 0.0
  %1341 = vmatprep.subr.mxu0 0.0
  %1342 = vmatpush2.msra.mxu0 0.0
  %1343 = vmatprep.subr.mxu0 0.0
  %1344 = vmatpush2.msra.mxu0 0.0
  %1345 = vmatprep.mubr.f32.mxu0 0.0
  %1346 = vmatmul.mubr.f32.gmra.mxu0 %v1279
  %v1347 = vpop.f32.mrf.mxu0
  %v1348 = vadd.f32 0.0, %v1347
  %v1349 = vpop.f32.mrf.mxu0
  %1350 = vdwg.mxu0
  %v1351 = vmul.f32 %v1348, 0.0078125
  %v1353 = vsel %vm1253, %v1273, 0
  %1355 = vmatprep.subr.mxu0 0.0
  %1356 = vmatpush1.msra.mxu0 0.0
  %1357 = vmatprep.subr.mxu0 0.0
  %1358 = vmatpush1.msra.mxu0 0.0
  %1359 = vmatprep.subr.mxu0 0.0
  %1360 = vmatpush1.msra.mxu0 0.0
  %1361 = vmatprep.subr.mxu0 0.0
  %1362 = vmatpush1.msra.mxu0 0.0
  %1363 = vmatprep.subr.mxu0 0.0
  %1364 = vmatpush1.msra.mxu0 0.0
  %1365 = vmatprep.subr.mxu0 0.0
  %1366 = vmatpush1.msra.mxu0 0.0
  %1367 = vmatprep.subr.mxu0 0.0
  %1368 = vmatpush1.msra.mxu0 0.0
  %1369 = vmatprep.subr.mxu0 0.0
  %1370 = vmatpush1.msra.mxu0 0.0
  %1371 = vmatprep.subr.mxu0 0.0
  %1372 = vmatpush1.msra.mxu0 0.0
  %1373 = vmatprep.subr.mxu0 0.0
  %1374 = vmatpush1.msra.mxu0 0.0
  %1375 = vmatprep.subr.mxu0 0.0
  %1376 = vmatpush1.msra.mxu0 0.0
  %1377 = vmatprep.subr.mxu0 0.0
  %1378 = vmatpush1.msra.mxu0 0.0
  %1379 = vmatprep.subr.mxu0 0.0
  %1380 = vmatpush1.msra.mxu0 %v1277
  %1381 = vmatprep.subr.mxu0 0.0
  %1382 = vmatpush1.msra.mxu0 %v1276
  %1383 = vmatprep.subr.mxu0 0.0
  %1384 = vmatpush1.msra.mxu0 %v1275
  %1385 = vmatprep.subr.mxu0 0.0
  %1386 = vmatpush1.msra.mxu0 %v1274
  %1387 = vmatprep.subr.mxu0 0.0
  %1388 = vmatpush2.msra.mxu0 0.0
  %1389 = vmatprep.subr.mxu0 0.0
  %1390 = vmatpush2.msra.mxu0 0.0
  %1391 = vmatprep.subr.mxu0 0.0
  %1392 = vmatpush2.msra.mxu0 0.0
  %1393 = vmatprep.subr.mxu0 0.0
  %1394 = vmatpush2.msra.mxu0 0.0
  %1395 = vmatprep.subr.mxu0 0.0
  %1396 = vmatpush2.msra.mxu0 0.0
  %1397 = vmatprep.subr.mxu0 0.0
  %1398 = vmatpush2.msra.mxu0 0.0
  %1399 = vmatprep.subr.mxu0 0.0
  %1400 = vmatpush2.msra.mxu0 0.0
  %1401 = vmatprep.subr.mxu0 0.0
  %1402 = vmatpush2.msra.mxu0 0.0
  %1403 = vmatprep.subr.mxu0 0.0
  %1404 = vmatpush2.msra.mxu0 0.0
  %1405 = vmatprep.subr.mxu0 0.0
  %1406 = vmatpush2.msra.mxu0 0.0
  %1407 = vmatprep.subr.mxu0 0.0
  %1408 = vmatpush2.msra.mxu0 0.0
  %1409 = vmatprep.subr.mxu0 0.0
  %1410 = vmatpush2.msra.mxu0 0.0
  %1411 = vmatprep.subr.mxu0 0.0
  %1412 = vmatpush2.msra.mxu0 0.0
  %1413 = vmatprep.subr.mxu0 0.0
  %1414 = vmatpush2.msra.mxu0 0.0
  %1415 = vmatprep.subr.mxu0 0.0
  %1416 = vmatpush2.msra.mxu0 0.0
  %1417 = vmatprep.subr.mxu0 0.0
  %1418 = vmatpush2.msra.mxu0 0.0
  %1419 = vmatprep.mubr.f32.mxu0 0.0
  %1420 = vmatmul.mubr.f32.gmra.mxu0 %v1353
  %v1421 = vpop.f32.mrf.mxu0
  %v1422 = vadd.f32 0.0, %v1421
  %v1423 = vpop.f32.mrf.mxu0
  %1424 = vdwg.mxu0
  %v1425 = vmul.f32 %v1422, 0.0078125
  %v1426 = vmul.f32 %v1351, %v1351
  %v1427 = vsub.f32 %v1425, %v1426
  %v1428 = vmax.f32 %v1427, 0.0
  %v1429 = vadd.f32 %v1428, 1e-05
  %v1430 = vrsqrt.pop %v1429
  %v1431 = vld [vmem:[%s10] sm:$0x1]
  %v1432 = vmul.f32 %v1431, %v1430
  %v1433 = vld [vmem:[%s11] sm:$0x1]
  %v1434 = vmul.f32 %v1351, %v1432
  %v1435 = vsub.f32 %v1433, %v1434
  %v1436 = vld [vmem:[%s13] sm:$0xf]
  %vm1437 = vcmask 31744
  %v1439 = vsel %vm1437, %v1432, 0
  %v1442 = vsel %vm124, %v1436, 0
  %1444 = vmatprep.subr.mxu0 0.0
  %1445 = vmatpush1.msra.mxu0 0.0
  %1446 = vmatprep.subr.mxu0 0.0
  %1447 = vmatpush1.msra.mxu0 0.0
  %1448 = vmatprep.subr.mxu0 0.0
  %1449 = vmatpush1.msra.mxu0 0.0
  %1450 = vmatprep.subr.mxu0 0.0
  %1451 = vmatpush1.msra.mxu0 0.0
  %1452 = vmatprep.subr.mxu0 0.0
  %1453 = vmatpush1.msra.mxu0 0.0
  %1454 = vmatprep.subr.mxu0 0.0
  %1455 = vmatpush1.msra.mxu0 0.0
  %1456 = vmatprep.subr.mxu0 0.0
  %1457 = vmatpush1.msra.mxu0 0.0
  %1458 = vmatprep.subr.mxu0 0.0
  %1459 = vmatpush1.msra.mxu0 0.0
  %1460 = vmatprep.subr.mxu0 0.0
  %1461 = vmatpush1.msra.mxu0 0.0
  %1462 = vmatprep.subr.mxu0 0.0
  %1463 = vmatpush1.msra.mxu0 0.0
  %1464 = vmatprep.subr.mxu0 0.0
  %1465 = vmatpush1.msra.mxu0 0.0
  %1466 = vmatprep.subr.mxu0 0.0
  %1467 = vmatpush1.msra.mxu0 0.0
  %1468 = vmatprep.subr.mxu0 0.0
  %1469 = vmatpush1.msra.mxu0 0.0
  %1470 = vmatprep.subr.mxu0 0.0
  %1471 = vmatpush1.msra.mxu0 0.0
  %1472 = vmatprep.subr.mxu0 0.0
  %1473 = vmatpush1.msra.mxu0 0.0
  %1474 = vmatprep.subr.mxu0 0.0
  %1475 = vmatpush1.msra.mxu0 %v1442
  %1476 = vmatprep.subr.mxu0 0.0
  %1477 = vmatpush2.msra.mxu0 0.0
  %1478 = vmatprep.subr.mxu0 0.0
  %1479 = vmatpush2.msra.mxu0 0.0
  %1480 = vmatprep.subr.mxu0 0.0
  %1481 = vmatpush2.msra.mxu0 0.0
  %1482 = vmatprep.subr.mxu0 0.0
  %1483 = vmatpush2.msra.mxu0 0.0
  %1484 = vmatprep.subr.mxu0 0.0
  %1485 = vmatpush2.msra.mxu0 0.0
  %1486 = vmatprep.subr.mxu0 0.0
  %1487 = vmatpush2.msra.mxu0 0.0
  %1488 = vmatprep.subr.mxu0 0.0
  %1489 = vmatpush2.msra.mxu0 0.0
  %1490 = vmatprep.subr.mxu0 0.0
  %1491 = vmatpush2.msra.mxu0 0.0
  %1492 = vmatprep.subr.mxu0 0.0
  %1493 = vmatpush2.msra.mxu0 0.0
  %1494 = vmatprep.subr.mxu0 0.0
  %1495 = vmatpush2.msra.mxu0 0.0
  %1496 = vmatprep.subr.mxu0 0.0
  %1497 = vmatpush2.msra.mxu0 0.0
  %1498 = vmatprep.subr.mxu0 0.0
  %1499 = vmatpush2.msra.mxu0 0.0
  %1500 = vmatprep.subr.mxu0 0.0
  %1501 = vmatpush2.msra.mxu0 0.0
  %1502 = vmatprep.subr.mxu0 0.0
  %1503 = vmatpush2.msra.mxu0 0.0
  %1504 = vmatprep.subr.mxu0 0.0
  %1505 = vmatpush2.msra.mxu0 0.0
  %1506 = vmatprep.subr.mxu0 0.0
  %1507 = vmatpush2.msra.mxu0 0.0
  %1508 = vmatprep.mubr.f32.mxu0 0.0
  %1509 = vmatmul.mubr.f32.gmra.mxu0 %v1439
  %v1510 = vpop.f32.mrf.mxu0
  %v1511 = vadd.f32 0.0, %v1510
  %v1512 = vpop.f32.mrf.mxu0
  %1513 = vdwg.mxu0
  %v1515 = vsel %vm1437, %v1435, 0
  %1517 = vmatprep.subr.mxu0 0.0
  %1518 = vmatpush1.msra.mxu0 0.0
  %1519 = vmatprep.subr.mxu0 0.0
  %1520 = vmatpush1.msra.mxu0 0.0
  %1521 = vmatprep.subr.mxu0 0.0
  %1522 = vmatpush1.msra.mxu0 0.0
  %1523 = vmatprep.subr.mxu0 0.0
  %1524 = vmatpush1.msra.mxu0 0.0
  %1525 = vmatprep.subr.mxu0 0.0
  %1526 = vmatpush1.msra.mxu0 0.0
  %1527 = vmatprep.subr.mxu0 0.0
  %1528 = vmatpush1.msra.mxu0 0.0
  %1529 = vmatprep.subr.mxu0 0.0
  %1530 = vmatpush1.msra.mxu0 0.0
  %1531 = vmatprep.subr.mxu0 0.0
  %1532 = vmatpush1.msra.mxu0 0.0
  %1533 = vmatprep.subr.mxu0 0.0
  %1534 = vmatpush1.msra.mxu0 0.0
  %1535 = vmatprep.subr.mxu0 0.0
  %1536 = vmatpush1.msra.mxu0 0.0
  %1537 = vmatprep.subr.mxu0 0.0
  %1538 = vmatpush1.msra.mxu0 0.0
  %1539 = vmatprep.subr.mxu0 0.0
  %1540 = vmatpush1.msra.mxu0 0.0
  %1541 = vmatprep.subr.mxu0 0.0
  %1542 = vmatpush1.msra.mxu0 0.0
  %1543 = vmatprep.subr.mxu0 0.0
  %1544 = vmatpush1.msra.mxu0 0.0
  %1545 = vmatprep.subr.mxu0 0.0
  %1546 = vmatpush1.msra.mxu0 0.0
  %1547 = vmatprep.subr.mxu0 0.0
  %1548 = vmatpush1.msra.mxu0 %v1442
  %1549 = vmatprep.subr.mxu0 0.0
  %1550 = vmatpush2.msra.mxu0 0.0
  %1551 = vmatprep.subr.mxu0 0.0
  %1552 = vmatpush2.msra.mxu0 0.0
  %1553 = vmatprep.subr.mxu0 0.0
  %1554 = vmatpush2.msra.mxu0 0.0
  %1555 = vmatprep.subr.mxu0 0.0
  %1556 = vmatpush2.msra.mxu0 0.0
  %1557 = vmatprep.subr.mxu0 0.0
  %1558 = vmatpush2.msra.mxu0 0.0
  %1559 = vmatprep.subr.mxu0 0.0
  %1560 = vmatpush2.msra.mxu0 0.0
  %1561 = vmatprep.subr.mxu0 0.0
  %1562 = vmatpush2.msra.mxu0 0.0
  %1563 = vmatprep.subr.mxu0 0.0
  %1564 = vmatpush2.msra.mxu0 0.0
  %1565 = vmatprep.subr.mxu0 0.0
  %1566 = vmatpush2.msra.mxu0 0.0
  %1567 = vmatprep.subr.mxu0 0.0
  %1568 = vmatpush2.msra.mxu0 0.0
  %1569 = vmatprep.subr.mxu0 0.0
  %1570 = vmatpush2.msra.mxu0 0.0
  %1571 = vmatprep.subr.mxu0 0.0
  %1572 = vmatpush2.msra.mxu0 0.0
  %1573 = vmatprep.subr.mxu0 0.0
  %1574 = vmatpush2.msra.mxu0 0.0
  %1575 = vmatprep.subr.mxu0 0.0
  %1576 = vmatpush2.msra.mxu0 0.0
  %1577 = vmatprep.subr.mxu0 0.0
  %1578 = vmatpush2.msra.mxu0 0.0
  %1579 = vmatprep.subr.mxu0 0.0
  %1580 = vmatpush2.msra.mxu0 0.0
  %1581 = vmatprep.mubr.f32.mxu0 0.0
  %1582 = vmatmul.mubr.f32.gmra.mxu0 %v1515
  %v1583 = vpop.f32.mrf.mxu0
  %v1584 = vadd.f32 0.0, %v1583
  %v1585 = vpop.f32.mrf.mxu0
  %1586 = vdwg.mxu0
  %v1587 = vlaneseq
  %v1588 = vshrl.u32 %v1587, 7
  %v1589 = vsub.s32 0, %v1588
  %v1590 = vrot.slane %v1511, %v1589
  %v1591 = vmul.f32 %v1155, %v1590
  %v1592 = vmul.f32 %v1160, %v1590
  %v1593 = vlaneseq
  %v1594 = vshrl.u32 %v1593, 7
  %v1595 = vsub.s32 0, %v1594
  %v1596 = vrot.slane %v1584, %v1595
  %v1597 = vadd.f32 %v1591, %v1596
  %v1598 = vadd.f32 %v1592, %v1596
  %v1599 = vadd.f32 %v1597, %v1245
  %v1600 = vadd.f32 %v1598, %v1250
  %v1601 = vmax.f32 %v1599, 0.0
  %v1602 = vmax.f32 %v1600, 0.0
  %1603 = vst.msk [vmem:[%s14] sm:$0xff] %vm1253, %v1601
  %1604 = vst.msk [vmem:[%s14 + $0x8] sm:$0xff] %vm1253, %v1602
  // Predicated region
  $region58: #{forward.1} parent=0 // pred_check
    _
  $region59: #{forward.1} parent=0 // pred_check_branch
    %1606 = sbr.rel (0) target = $region61
  $region60: #{forward.1} parent=0 // pred_region
    _
  $region61: #{forward.1} parent=0 // pred_fallthru
    _
  // Predicated region
  $region62: #{forward.1} parent=0 // pred_check
    _
  $region63: #{forward.1} parent=0 // pred_check_branch
    %1608 = sbr.rel (0) target = $region65
  $region64: #{forward.1} parent=0 // pred_region
    _
  $region65: #{forward.1} parent=0 // pred_fallthru
    _

</llo_original>
